<compile_context>
chip_gen: v6e
topology: v6e:2x2x1
jax: 0.10.0
libtpu: 0.0.40
codegen_flags: <defaults>
</compile_context>

<pallas_src>
import jax
import jax.numpy as jnp
import numpy as np
from jax import lax
from jax.experimental import pallas as pl
from jax.experimental.pallas import tpu as pltpu


# ----------------------------- Pallas kernel ------------------------------ #
def bilstm_kernel(x_ref, w_in_ref, w_hh_ref, b_ref, out_ref, gates_ref):
    """Single-layer bidirectional LSTM, whole sequence resident in VMEM.

    x_ref     : (T, B, D)      time-major embedded inputs (B sublane-padded)
    w_in_ref  : (D, 8H)        [W_ih_f^T | W_ih_b^T]   (gate order i,f,g,o)
    w_hh_ref  : (2H, 8H)       block-diag([W_hh_f^T, W_hh_b^T])
    b_ref     : (1, 8H)        [b_ih_f+b_hh_f | b_ih_b+b_hh_b]
    out_ref   : (T, 2, B, H)   dir 0 = forward at time t, dir 1 = backward
    gates_ref : (T, B, 8H)     VMEM scratch: hoisted input projection
    """
    T, B, D = x_ref.shape
    G8 = w_in_ref.shape[1]          # 8H
    G4 = G8 // 2                    # 4H
    H = G4 // 4
    H2 = 2 * H

    # (1) Hoisted input projection: ONE wide MXU matmul for both directions.
    w_in = w_in_ref[...]                          # loaded once
    bias = b_ref[...]
    x2d = x_ref[...].reshape(T * B, D)
    gates_ref[...] = (
        jnp.dot(x2d, w_in, preferred_element_type=jnp.float32) + bias
    ).reshape(T, B, G8)

    # (2) Recurrent weight loaded once, closed over (no per-step vld/broadcast).
    w_hh = w_hh_ref[...]                          # (2H, 8H) block-diagonal

    def body(t, carry):
        h_cat, c_cat = carry                      # (B, 2H): [fwd | bwd]
        rt = T - 1 - t
        # Forward direction consumes the projection at t, backward at T-1-t.
        g_in = jnp.concatenate(
            [gates_ref[t][:, :G4], gates_ref[rt][:, G4:]], axis=-1)   # (B, 8H)
        # (3) Single fused MXU push per step for both directions.
        gates = g_in + jnp.dot(h_cat, w_hh, preferred_element_type=jnp.float32)
        # (4) Dense transcendentals over the full (B, 8H) block.
        sig = jax.nn.sigmoid(gates)
        th = jnp.tanh(gates)
        i = jnp.concatenate([sig[:, 0 * H:1 * H], sig[:, 4 * H:5 * H]], axis=-1)
        f = jnp.concatenate([sig[:, 1 * H:2 * H], sig[:, 5 * H:6 * H]], axis=-1)
        g = jnp.concatenate([th[:, 2 * H:3 * H], th[:, 6 * H:7 * H]], axis=-1)
        o = jnp.concatenate([sig[:, 3 * H:4 * H], sig[:, 7 * H:8 * H]], axis=-1)
        c_cat = f * c_cat + i * g
        h_cat = o * jnp.tanh(c_cat)
        out_ref[t, 0] = h_cat[:, :H]              # forward hidden at time t
        out_ref[rt, 1] = h_cat[:, H:]             # backward hidden at time T-1-t
        return h_cat, c_cat

    zeros = jnp.zeros((B, H2), jnp.float32)
    # (5) Unrolled time loop: lets the LLO scheduler interleave independent
    #     forward/backward work of adjacent steps.
    lax.fori_loop(0, T, body, (zeros, zeros), unroll=True if T <= 32 else 8)


def bilstm_pallas(x_emb, w_in, w_hh_bd, b_cat):
    """x_emb: (B, T, D) f32 -> output: (B, T, 2H) f32 ([forward | backward])."""
    B, T, D = x_emb.shape
    H = w_in.shape[1] // 8
    B_pad = max(8, ((B + 7) // 8) * 8)            # sublane-dense batch

    x_tm = jnp.transpose(x_emb, (1, 0, 2))        # (T, B, D) time-major
    if B_pad != B:
        x_tm = jnp.pad(x_tm, ((0, 0), (0, B_pad - B), (0, 0)))

    vmem = pl.BlockSpec(memory_space=pltpu.MemorySpace.VMEM)
    out = pl.pallas_call(
        bilstm_kernel,
        out_shape=jax.ShapeDtypeStruct((T, 2, B_pad, H), jnp.float32),
        in_specs=[vmem, vmem, vmem, vmem],
        out_specs=vmem,
        scratch_shapes=[pltpu.VMEM((T, B_pad, 8 * H), jnp.float32)],
        compiler_params=pltpu.CompilerParams(
            vmem_limit_bytes=48 * 1024 * 1024),
    )(x_tm, w_in, w_hh_bd, b_cat)

    # (T, 2, B, H) -> (B, T, 2H): single fused transpose+reshape replaces the
    # previous wrapper-side concatenate + transpose (one fewer HBM round-trip).
    out = out[:, :, :B, :]
    return jnp.transpose(out, (2, 0, 1, 3)).reshape(B, T, 2 * H)


# ----------------------- module parameters / wrapper ----------------------- #
def init_lstm_encoder_params(key, vocab_size, word_dim, hidden_dim):
    """Deterministic synthetic parameters (shapes match the PyTorch module)."""
    ks = jax.random.split(key, 10)
    H, D = hidden_dim, word_dim
    bound = 1.0 / np.sqrt(H)

    def u(k, shape):
        return jax.random.uniform(k, shape, jnp.float32, -bound, bound)

    # word embedding (glove table is synthesized here; padding_idx=0 row is 0)
    emb = jax.random.normal(ks[0], (vocab_size, D), jnp.float32) * 0.1
    emb = emb.at[0].set(0.0)

    params = {
        "embedding": emb,
        # PyTorch nn.LSTM parameter shapes: weight_ih_l0 (4H,D), weight_hh_l0 (4H,H)
        "w_ih_f": u(ks[1], (4 * H, D)), "w_hh_f": u(ks[2], (4 * H, H)),
        "b_ih_f": u(ks[3], (4 * H,)),   "b_hh_f": u(ks[4], (4 * H,)),
        "w_ih_b": u(ks[5], (4 * H, D)), "w_hh_b": u(ks[6], (4 * H, H)),
        "b_ih_b": u(ks[7], (4 * H,)),   "b_hh_b": u(ks[8], (4 * H,)),
    }
    return params


def lstm_encoder_forward(params, x, mask=None):
    """Equivalent of LSTMEncoder.forward_single: returns (output, mask)."""
    H = params["w_hh_f"].shape[1]
    # Glue: embedding gather stays in plain JAX (padding_idx=0 row is zero).
    x_emb = params["embedding"][x]                                     # (B, T, D)
    # Glue: fold both directions into one wide input weight and one
    # block-diagonal recurrent weight so the kernel does a single input matmul
    # and a single recurrent matmul per step.
    w_in = jnp.concatenate([params["w_ih_f"].T, params["w_ih_b"].T], axis=1)   # (D, 8H)
    z = jnp.zeros((H, 4 * H), jnp.float32)
    w_hh_bd = jnp.concatenate(
        [jnp.concatenate([params["w_hh_f"].T, z], axis=1),
         jnp.concatenate([z, params["w_hh_b"].T], axis=1)], axis=0)            # (2H, 8H)
    b_cat = jnp.concatenate(
        [params["b_ih_f"] + params["b_hh_f"],
         params["b_ih_b"] + params["b_hh_b"]])[None, :]                        # (1, 8H)
    output = bilstm_pallas(x_emb, w_in, w_hh_bd, b_cat)
    return output, mask


# ----------------------------- pure-JAX reference -------------------------- #
def _lstm_dir_ref(x_tm, wih_t, whh_t, b, reverse):
    T, B, _ = x_tm.shape
    H = whh_t.shape[0]
    xs = x_tm[::-1] if reverse else x_tm

    def step(carry, x_t):
        h, c = carry
        gates = (jnp.dot(x_t, wih_t, precision=lax.Precision.HIGHEST)
                 + jnp.dot(h, whh_t, precision=lax.Precision.HIGHEST) + b)
        i = jax.nn.sigmoid(gates[:, 0 * H:1 * H])
        f = jax.nn.sigmoid(gates[:, 1 * H:2 * H])
        g = jnp.tanh(gates[:, 2 * H:3 * H])
        o = jax.nn.sigmoid(gates[:, 3 * H:4 * H])
        c = f * c + i * g
        h = o * jnp.tanh(c)
        return (h, c), h

    z = jnp.zeros((B, H), jnp.float32)
    _, ys = lax.scan(step, (z, z), xs)
    return ys[::-1] if reverse else ys


def lstm_encoder_forward_ref(params, x):
    x_emb = params["embedding"][x]
    x_tm = jnp.transpose(x_emb, (1, 0, 2))
    f = _lstm_dir_ref(x_tm, params["w_ih_f"].T, params["w_hh_f"].T,
                      params["b_ih_f"] + params["b_hh_f"], reverse=False)
    b = _lstm_dir_ref(x_tm, params["w_ih_b"].T, params["w_hh_b"].T,
                      params["b_ih_b"] + params["b_hh_b"], reverse=True)
    return jnp.transpose(jnp.concatenate([f, b], axis=-1), (1, 0, 2))


# ---------------------------------- main ----------------------------------- #
if __name__ == "__main__":
    B, T = 2, 8               # batch, sequence length
    VOCAB, D, H = 50, 32, 32  # vocab size, word_dim, hidden_dim

    key = jax.random.PRNGKey(0)
    k_params, k_ids = jax.random.split(key)
    params = init_lstm_encoder_params(k_params, VOCAB, D, H)

    # token ids (avoid 0 = <pad> for most, but include a couple of pads)
    x = jax.random.randint(k_ids, (B, T), 1, VOCAB, dtype=jnp.int32)
    x = x.at[:, -1].set(0)
    mask = (x != 0).astype(jnp.float32)

    output, out_mask = lstm_encoder_forward(params, x, mask)
    output = jax.block_until_ready(output)

    assert output.shape == (B, T, 2 * H), output.shape

    ref = jax.block_until_ready(lstm_encoder_forward_ref(params, x))
    np.testing.assert_allclose(np.asarray(output), np.asarray(ref),
                               rtol=1e-3, atol=1e-3)

    print("KERNEL_OK")
</pallas_src>

<mosaic_0001>
module attributes {stable_mosaic.version = 11 : i64} {
  func.func @bilstm_kernel(%arg0: memref<8x8x32xf32, #tpu.memory_space<vmem>>, %arg1: memref<32x256xf32, #tpu.memory_space<vmem>>, %arg2: memref<64x256xf32, #tpu.memory_space<vmem>>, %arg3: memref<1x256xf32, #tpu.memory_space<vmem>>, %arg4: memref<8x2x8x32xf32, #tpu.memory_space<vmem>>, %arg5: memref<8x8x256xf32, #tpu.memory_space<vmem>>) attributes {dimension_semantics = [], scalar_prefetch = 0 : i64, scratch_operands = 1 : i64, tpu.core_type = #tpu.core_type<tc>} {
    %c0 = arith.constant 0 : index
    %c0_0 = arith.constant 0 : index
    %0 = vector.load %arg1[%c0, %c0_0] : memref<32x256xf32, #tpu.memory_space<vmem>>, vector<32x256xf32>
    %c0_1 = arith.constant 0 : index
    %c0_2 = arith.constant 0 : index
    %1 = vector.load %arg3[%c0_1, %c0_2] : memref<1x256xf32, #tpu.memory_space<vmem>>, vector<1x256xf32>
    %c0_3 = arith.constant 0 : index
    %c0_4 = arith.constant 0 : index
    %c0_5 = arith.constant 0 : index
    %2 = vector.load %arg0[%c0_3, %c0_4, %c0_5] : memref<8x8x32xf32, #tpu.memory_space<vmem>>, vector<8x8x32xf32>
    %3 = vector.shape_cast %2 : vector<8x8x32xf32> to vector<64x32xf32>
    %cst = arith.constant dense<0.000000e+00> : vector<64x256xf32>
    %4 = tpu.matmul %3, %0, %cst {dimension_numbers = #tpu.dot_dimension_numbers<[1], [0], [0], [1], [0, 0, 1, 1], [], []>} : vector<64x32xf32>, vector<32x256xf32>, vector<64x256xf32> -> vector<64x256xf32>
    %5 = vector.broadcast %1 : vector<1x256xf32> to vector<64x256xf32>
    %6 = arith.addf %4, %5 : vector<64x256xf32>
    %7 = vector.shape_cast %6 : vector<64x256xf32> to vector<8x8x256xf32>
    %c0_6 = arith.constant 0 : index
    %c0_7 = arith.constant 0 : index
    %c0_8 = arith.constant 0 : index
    %8 = vector.load %arg5[%c0_6, %c0_7, %c0_8] : memref<8x8x256xf32, #tpu.memory_space<vmem>>, vector<8x8x256xf32>
    tpu.vector_store %arg5[%c0_6, %c0_7, %c0_8], %7 {strides = array<i32>} : memref<8x8x256xf32, #tpu.memory_space<vmem>>, vector<8x8x256xf32>,
    %c0_9 = arith.constant 0 : index
    %c0_10 = arith.constant 0 : index
    %9 = vector.load %arg2[%c0_9, %c0_10] : memref<64x256xf32, #tpu.memory_space<vmem>>, vector<64x256xf32>
    %cst_11 = arith.constant 0.000000e+00 : f32
    %10 = vector.broadcast %cst_11 : f32 to vector<8x64xf32>
    %c0_i32 = arith.constant 0 : i32
    %c7_i32 = arith.constant 7 : i32
    %11 = arith.subi %c7_i32, %c0_i32 : i32
    %12 = arith.index_cast %c0_i32 : i32 to index
    %c0_12 = arith.constant 0 : index
    %c0_13 = arith.constant 0 : index
    %13 = vector.load %arg5[%12, %c0_12, %c0_13] : memref<8x8x256xf32, #tpu.memory_space<vmem>>, vector<1x8x256xf32>
    %14 = vector.shape_cast %13 : vector<1x8x256xf32> to vector<8x256xf32>
    %15 = vector.extract_strided_slice %14 {offsets = [0, 0], sizes = [8, 128], strides = [1, 1]} : vector<8x256xf32> to vector<8x128xf32>
    %16 = arith.index_cast %11 : i32 to index
    %c0_14 = arith.constant 0 : index
    %c0_15 = arith.constant 0 : index
    %17 = vector.load %arg5[%16, %c0_14, %c0_15] : memref<8x8x256xf32, #tpu.memory_space<vmem>>, vector<1x8x256xf32>
    %18 = vector.shape_cast %17 : vector<1x8x256xf32> to vector<8x256xf32>
    %19 = vector.extract_strided_slice %18 {offsets = [0, 128], sizes = [8, 128], strides = [1, 1]} : vector<8x256xf32> to vector<8x128xf32>
    %20 = tpu.concatenate %15, %19 in 1 : vector<8x128xf32>, vector<8x128xf32> -> vector<8x256xf32>
    %cst_16 = arith.constant dense<0.000000e+00> : vector<8x256xf32>
    %21 = tpu.matmul %10, %9, %cst_16 {dimension_numbers = #tpu.dot_dimension_numbers<[1], [0], [0], [1], [0, 0, 1, 1], [], []>} : vector<8x64xf32>, vector<64x256xf32>, vector<8x256xf32> -> vector<8x256xf32>
    %22 = arith.addf %20, %21 : vector<8x256xf32>
    %23 = arith.negf %22 : vector<8x256xf32>
    %24 = math.exp %23 : vector<8x256xf32>
    %cst_17 = arith.constant 1.000000e+00 : f32
    %25 = vector.broadcast %cst_17 : f32 to vector<8x256xf32>
    %26 = arith.addf %25, %24 : vector<8x256xf32>
    %27 = arith.divf %25, %26 : vector<8x256xf32>
    %28 = math.tanh %22 : vector<8x256xf32>
    %29 = vector.extract_strided_slice %27 {offsets = [0, 0], sizes = [8, 32], strides = [1, 1]} : vector<8x256xf32> to vector<8x32xf32>
    %30 = vector.extract_strided_slice %27 {offsets = [0, 128], sizes = [8, 32], strides = [1, 1]} : vector<8x256xf32> to vector<8x32xf32>
    %31 = tpu.concatenate %29, %30 in 1 : vector<8x32xf32>, vector<8x32xf32> -> vector<8x64xf32>
    %32 = vector.extract_strided_slice %27 {offsets = [0, 32], sizes = [8, 32], strides = [1, 1]} : vector<8x256xf32> to vector<8x32xf32>
    %33 = vector.extract_strided_slice %27 {offsets = [0, 160], sizes = [8, 32], strides = [1, 1]} : vector<8x256xf32> to vector<8x32xf32>
    %34 = tpu.concatenate %32, %33 in 1 : vector<8x32xf32>, vector<8x32xf32> -> vector<8x64xf32>
    %35 = vector.extract_strided_slice %28 {offsets = [0, 64], sizes = [8, 32], strides = [1, 1]} : vector<8x256xf32> to vector<8x32xf32>
    %36 = vector.extract_strided_slice %28 {offsets = [0, 192], sizes = [8, 32], strides = [1, 1]} : vector<8x256xf32> to vector<8x32xf32>
    %37 = tpu.concatenate %35, %36 in 1 : vector<8x32xf32>, vector<8x32xf32> -> vector<8x64xf32>
    %38 = vector.extract_strided_slice %27 {offsets = [0, 96], sizes = [8, 32], strides = [1, 1]} : vector<8x256xf32> to vector<8x32xf32>
    %39 = vector.extract_strided_slice %27 {offsets = [0, 224], sizes = [8, 32], strides = [1, 1]} : vector<8x256xf32> to vector<8x32xf32>
    %40 = tpu.concatenate %38, %39 in 1 : vector<8x32xf32>, vector<8x32xf32> -> vector<8x64xf32>
    %41 = arith.mulf %34, %10 : vector<8x64xf32>
    %42 = arith.mulf %31, %37 : vector<8x64xf32>
    %43 = arith.addf %41, %42 : vector<8x64xf32>
    %44 = math.tanh %43 : vector<8x64xf32>
    %45 = arith.mulf %40, %44 : vector<8x64xf32>
    %46 = vector.extract_strided_slice %45 {offsets = [0, 0], sizes = [8, 32], strides = [1, 1]} : vector<8x64xf32> to vector<8x32xf32>
    %47 = arith.index_cast %c0_i32 : i32 to index
    %c0_18 = arith.constant 0 : index
    %c0_19 = arith.constant 0 : index
    %c0_20 = arith.constant 0 : index
    %48 = vector.load %arg4[%47, %c0_18, %c0_19, %c0_20] : memref<8x2x8x32xf32, #tpu.memory_space<vmem>>, vector<1x1x8x32xf32>
    %49 = vector.shape_cast %48 : vector<1x1x8x32xf32> to vector<8x32xf32>
    %50 = vector.shape_cast %46 : vector<8x32xf32> to vector<1x1x8x32xf32>
    tpu.vector_store %arg4[%47, %c0_18, %c0_19, %c0_20], %50 {strides = array<i32>} : memref<8x2x8x32xf32, #tpu.memory_space<vmem>>, vector<1x1x8x32xf32>,
    %51 = vector.extract_strided_slice %45 {offsets = [0, 32], sizes = [8, 32], strides = [1, 1]} : vector<8x64xf32> to vector<8x32xf32>
    %52 = arith.index_cast %11 : i32 to index
    %c1 = arith.constant 1 : index
    %c0_21 = arith.constant 0 : index
    %c0_22 = arith.constant 0 : index
    %53 = vector.load %arg4[%52, %c1, %c0_21, %c0_22] : memref<8x2x8x32xf32, #tpu.memory_space<vmem>>, vector<1x1x8x32xf32>
    %54 = vector.shape_cast %53 : vector<1x1x8x32xf32> to vector<8x32xf32>
    %55 = vector.shape_cast %51 : vector<8x32xf32> to vector<1x1x8x32xf32>
    tpu.vector_store %arg4[%52, %c1, %c0_21, %c0_22], %55 {strides = array<i32>} : memref<8x2x8x32xf32, #tpu.memory_space<vmem>>, vector<1x1x8x32xf32>,
    %c1_i32 = arith.constant 1 : i32
    %c7_i32_23 = arith.constant 7 : i32
    %56 = arith.subi %c7_i32_23, %c1_i32 : i32
    %57 = arith.index_cast %c1_i32 : i32 to index
    %c0_24 = arith.constant 0 : index
    %c0_25 = arith.constant 0 : index
    %58 = vector.load %arg5[%57, %c0_24, %c0_25] : memref<8x8x256xf32, #tpu.memory_space<vmem>>, vector<1x8x256xf32>
    %59 = vector.shape_cast %58 : vector<1x8x256xf32> to vector<8x256xf32>
    %60 = vector.extract_strided_slice %59 {offsets = [0, 0], sizes = [8, 128], strides = [1, 1]} : vector<8x256xf32> to vector<8x128xf32>
    %61 = arith.index_cast %56 : i32 to index
    %c0_26 = arith.constant 0 : index
    %c0_27 = arith.constant 0 : index
    %62 = vector.load %arg5[%61, %c0_26, %c0_27] : memref<8x8x256xf32, #tpu.memory_space<vmem>>, vector<1x8x256xf32>
    %63 = vector.shape_cast %62 : vector<1x8x256xf32> to vector<8x256xf32>
    %64 = vector.extract_strided_slice %63 {offsets = [0, 128], sizes = [8, 128], strides = [1, 1]} : vector<8x256xf32> to vector<8x128xf32>
    %65 = tpu.concatenate %60, %64 in 1 : vector<8x128xf32>, vector<8x128xf32> -> vector<8x256xf32>
    %cst_28 = arith.constant dense<0.000000e+00> : vector<8x256xf32>
    %66 = tpu.matmul %45, %9, %cst_28 {dimension_numbers = #tpu.dot_dimension_numbers<[1], [0], [0], [1], [0, 0, 1, 1], [], []>} : vector<8x64xf32>, vector<64x256xf32>, vector<8x256xf32> -> vector<8x256xf32>
    %67 = arith.addf %65, %66 : vector<8x256xf32>
    %68 = arith.negf %67 : vector<8x256xf32>
    %69 = math.exp %68 : vector<8x256xf32>
    %cst_29 = arith.constant 1.000000e+00 : f32
    %70 = vector.broadcast %cst_29 : f32 to vector<8x256xf32>
    %71 = arith.addf %70, %69 : vector<8x256xf32>
    %72 = arith.divf %70, %71 : vector<8x256xf32>
    %73 = math.tanh %67 : vector<8x256xf32>
    %74 = vector.extract_strided_slice %72 {offsets = [0, 0], sizes = [8, 32], strides = [1, 1]} : vector<8x256xf32> to vector<8x32xf32>
    %75 = vector.extract_strided_slice %72 {offsets = [0, 128], sizes = [8, 32], strides = [1, 1]} : vector<8x256xf32> to vector<8x32xf32>
    %76 = tpu.concatenate %74, %75 in 1 : vector<8x32xf32>, vector<8x32xf32> -> vector<8x64xf32>
    %77 = vector.extract_strided_slice %72 {offsets = [0, 32], sizes = [8, 32], strides = [1, 1]} : vector<8x256xf32> to vector<8x32xf32>
    %78 = vector.extract_strided_slice %72 {offsets = [0, 160], sizes = [8, 32], strides = [1, 1]} : vector<8x256xf32> to vector<8x32xf32>
    %79 = tpu.concatenate %77, %78 in 1 : vector<8x32xf32>, vector<8x32xf32> -> vector<8x64xf32>
    %80 = vector.extract_strided_slice %73 {offsets = [0, 64], sizes = [8, 32], strides = [1, 1]} : vector<8x256xf32> to vector<8x32xf32>
    %81 = vector.extract_strided_slice %73 {offsets = [0, 192], sizes = [8, 32], strides = [1, 1]} : vector<8x256xf32> to vector<8x32xf32>
    %82 = tpu.concatenate %80, %81 in 1 : vector<8x32xf32>, vector<8x32xf32> -> vector<8x64xf32>
    %83 = vector.extract_strided_slice %72 {offsets = [0, 96], sizes = [8, 32], strides = [1, 1]} : vector<8x256xf32> to vector<8x32xf32>
    %84 = vector.extract_strided_slice %72 {offsets = [0, 224], sizes = [8, 32], strides = [1, 1]} : vector<8x256xf32> to vector<8x32xf32>
    %85 = tpu.concatenate %83, %84 in 1 : vector<8x32xf32>, vector<8x32xf32> -> vector<8x64xf32>
    %86 = arith.mulf %79, %43 : vector<8x64xf32>
    %87 = arith.mulf %76, %82 : vector<8x64xf32>
    %88 = arith.addf %86, %87 : vector<8x64xf32>
    %89 = math.tanh %88 : vector<8x64xf32>
    %90 = arith.mulf %85, %89 : vector<8x64xf32>
    %91 = vector.extract_strided_slice %90 {offsets = [0, 0], sizes = [8, 32], strides = [1, 1]} : vector<8x64xf32> to vector<8x32xf32>
    %92 = arith.index_cast %c1_i32 : i32 to index
    %c0_30 = arith.constant 0 : index
    %c0_31 = arith.constant 0 : index
    %c0_32 = arith.constant 0 : index
    %93 = vector.load %arg4[%92, %c0_30, %c0_31, %c0_32] : memref<8x2x8x32xf32, #tpu.memory_space<vmem>>, vector<1x1x8x32xf32>
    %94 = vector.shape_cast %93 : vector<1x1x8x32xf32> to vector<8x32xf32>
    %95 = vector.shape_cast %91 : vector<8x32xf32> to vector<1x1x8x32xf32>
    tpu.vector_store %arg4[%92, %c0_30, %c0_31, %c0_32], %95 {strides = array<i32>} : memref<8x2x8x32xf32, #tpu.memory_space<vmem>>, vector<1x1x8x32xf32>,
    %96 = vector.extract_strided_slice %90 {offsets = [0, 32], sizes = [8, 32], strides = [1, 1]} : vector<8x64xf32> to vector<8x32xf32>
    %97 = arith.index_cast %56 : i32 to index
    %c1_33 = arith.constant 1 : index
    %c0_34 = arith.constant 0 : index
    %c0_35 = arith.constant 0 : index
    %98 = vector.load %arg4[%97, %c1_33, %c0_34, %c0_35] : memref<8x2x8x32xf32, #tpu.memory_space<vmem>>, vector<1x1x8x32xf32>
    %99 = vector.shape_cast %98 : vector<1x1x8x32xf32> to vector<8x32xf32>
    %100 = vector.shape_cast %96 : vector<8x32xf32> to vector<1x1x8x32xf32>
    tpu.vector_store %arg4[%97, %c1_33, %c0_34, %c0_35], %100 {strides = array<i32>} : memref<8x2x8x32xf32, #tpu.memory_space<vmem>>, vector<1x1x8x32xf32>,
    %c2_i32 = arith.constant 2 : i32
    %c7_i32_36 = arith.constant 7 : i32
    %101 = arith.subi %c7_i32_36, %c2_i32 : i32
    %102 = arith.index_cast %c2_i32 : i32 to index
    %c0_37 = arith.constant 0 : index
    %c0_38 = arith.constant 0 : index
    %103 = vector.load %arg5[%102, %c0_37, %c0_38] : memref<8x8x256xf32, #tpu.memory_space<vmem>>, vector<1x8x256xf32>
    %104 = vector.shape_cast %103 : vector<1x8x256xf32> to vector<8x256xf32>
    %105 = vector.extract_strided_slice %104 {offsets = [0, 0], sizes = [8, 128], strides = [1, 1]} : vector<8x256xf32> to vector<8x128xf32>
    %106 = arith.index_cast %101 : i32 to index
    %c0_39 = arith.constant 0 : index
    %c0_40 = arith.constant 0 : index
    %107 = vector.load %arg5[%106, %c0_39, %c0_40] : memref<8x8x256xf32, #tpu.memory_space<vmem>>, vector<1x8x256xf32>
    %108 = vector.shape_cast %107 : vector<1x8x256xf32> to vector<8x256xf32>
    %109 = vector.extract_strided_slice %108 {offsets = [0, 128], sizes = [8, 128], strides = [1, 1]} : vector<8x256xf32> to vector<8x128xf32>
    %110 = tpu.concatenate %105, %109 in 1 : vector<8x128xf32>, vector<8x128xf32> -> vector<8x256xf32>
    %cst_41 = arith.constant dense<0.000000e+00> : vector<8x256xf32>
    %111 = tpu.matmul %90, %9, %cst_41 {dimension_numbers = #tpu.dot_dimension_numbers<[1], [0], [0], [1], [0, 0, 1, 1], [], []>} : vector<8x64xf32>, vector<64x256xf32>, vector<8x256xf32> -> vector<8x256xf32>
    %112 = arith.addf %110, %111 : vector<8x256xf32>
    %113 = arith.negf %112 : vector<8x256xf32>
    %114 = math.exp %113 : vector<8x256xf32>
    %cst_42 = arith.constant 1.000000e+00 : f32
    %115 = vector.broadcast %cst_42 : f32 to vector<8x256xf32>
    %116 = arith.addf %115, %114 : vector<8x256xf32>
    %117 = arith.divf %115, %116 : vector<8x256xf32>
    %118 = math.tanh %112 : vector<8x256xf32>
    %119 = vector.extract_strided_slice %117 {offsets = [0, 0], sizes = [8, 32], strides = [1, 1]} : vector<8x256xf32> to vector<8x32xf32>
    %120 = vector.extract_strided_slice %117 {offsets = [0, 128], sizes = [8, 32], strides = [1, 1]} : vector<8x256xf32> to vector<8x32xf32>
    %121 = tpu.concatenate %119, %120 in 1 : vector<8x32xf32>, vector<8x32xf32> -> vector<8x64xf32>
    %122 = vector.extract_strided_slice %117 {offsets = [0, 32], sizes = [8, 32], strides = [1, 1]} : vector<8x256xf32> to vector<8x32xf32>
    %123 = vector.extract_strided_slice %117 {offsets = [0, 160], sizes = [8, 32], strides = [1, 1]} : vector<8x256xf32> to vector<8x32xf32>
    %124 = tpu.concatenate %122, %123 in 1 : vector<8x32xf32>, vector<8x32xf32> -> vector<8x64xf32>
    %125 = vector.extract_strided_slice %118 {offsets = [0, 64], sizes = [8, 32], strides = [1, 1]} : vector<8x256xf32> to vector<8x32xf32>
    %126 = vector.extract_strided_slice %118 {offsets = [0, 192], sizes = [8, 32], strides = [1, 1]} : vector<8x256xf32> to vector<8x32xf32>
    %127 = tpu.concatenate %125, %126 in 1 : vector<8x32xf32>, vector<8x32xf32> -> vector<8x64xf32>
    %128 = vector.extract_strided_slice %117 {offsets = [0, 96], sizes = [8, 32], strides = [1, 1]} : vector<8x256xf32> to vector<8x32xf32>
    %129 = vector.extract_strided_slice %117 {offsets = [0, 224], sizes = [8, 32], strides = [1, 1]} : vector<8x256xf32> to vector<8x32xf32>
    %130 = tpu.concatenate %128, %129 in 1 : vector<8x32xf32>, vector<8x32xf32> -> vector<8x64xf32>
    %131 = arith.mulf %124, %88 : vector<8x64xf32>
    %132 = arith.mulf %121, %127 : vector<8x64xf32>
    %133 = arith.addf %131, %132 : vector<8x64xf32>
    %134 = math.tanh %133 : vector<8x64xf32>
    %135 = arith.mulf %130, %134 : vector<8x64xf32>
    %136 = vector.extract_strided_slice %135 {offsets = [0, 0], sizes = [8, 32], strides = [1, 1]} : vector<8x64xf32> to vector<8x32xf32>
    %137 = arith.index_cast %c2_i32 : i32 to index
    %c0_43 = arith.constant 0 : index
    %c0_44 = arith.constant 0 : index
    %c0_45 = arith.constant 0 : index
    %138 = vector.load %arg4[%137, %c0_43, %c0_44, %c0_45] : memref<8x2x8x32xf32, #tpu.memory_space<vmem>>, vector<1x1x8x32xf32>
    %139 = vector.shape_cast %138 : vector<1x1x8x32xf32> to vector<8x32xf32>
    %140 = vector.shape_cast %136 : vector<8x32xf32> to vector<1x1x8x32xf32>
    tpu.vector_store %arg4[%137, %c0_43, %c0_44, %c0_45], %140 {strides = array<i32>} : memref<8x2x8x32xf32, #tpu.memory_space<vmem>>, vector<1x1x8x32xf32>,
    %141 = vector.extract_strided_slice %135 {offsets = [0, 32], sizes = [8, 32], strides = [1, 1]} : vector<8x64xf32> to vector<8x32xf32>
    %142 = arith.index_cast %101 : i32 to index
    %c1_46 = arith.constant 1 : index
    %c0_47 = arith.constant 0 : index
    %c0_48 = arith.constant 0 : index
    %143 = vector.load %arg4[%142, %c1_46, %c0_47, %c0_48] : memref<8x2x8x32xf32, #tpu.memory_space<vmem>>, vector<1x1x8x32xf32>
    %144 = vector.shape_cast %143 : vector<1x1x8x32xf32> to vector<8x32xf32>
    %145 = vector.shape_cast %141 : vector<8x32xf32> to vector<1x1x8x32xf32>
    tpu.vector_store %arg4[%142, %c1_46, %c0_47, %c0_48], %145 {strides = array<i32>} : memref<8x2x8x32xf32, #tpu.memory_space<vmem>>, vector<1x1x8x32xf32>,
    %c3_i32 = arith.constant 3 : i32
    %c7_i32_49 = arith.constant 7 : i32
    %146 = arith.subi %c7_i32_49, %c3_i32 : i32
    %147 = arith.index_cast %c3_i32 : i32 to index
    %c0_50 = arith.constant 0 : index
    %c0_51 = arith.constant 0 : index
    %148 = vector.load %arg5[%147, %c0_50, %c0_51] : memref<8x8x256xf32, #tpu.memory_space<vmem>>, vector<1x8x256xf32>
    %149 = vector.shape_cast %148 : vector<1x8x256xf32> to vector<8x256xf32>
    %150 = vector.extract_strided_slice %149 {offsets = [0, 0], sizes = [8, 128], strides = [1, 1]} : vector<8x256xf32> to vector<8x128xf32>
    %151 = arith.index_cast %146 : i32 to index
    %c0_52 = arith.constant 0 : index
    %c0_53 = arith.constant 0 : index
    %152 = vector.load %arg5[%151, %c0_52, %c0_53] : memref<8x8x256xf32, #tpu.memory_space<vmem>>, vector<1x8x256xf32>
    %153 = vector.shape_cast %152 : vector<1x8x256xf32> to vector<8x256xf32>
    %154 = vector.extract_strided_slice %153 {offsets = [0, 128], sizes = [8, 128], strides = [1, 1]} : vector<8x256xf32> to vector<8x128xf32>
    %155 = tpu.concatenate %150, %154 in 1 : vector<8x128xf32>, vector<8x128xf32> -> vector<8x256xf32>
    %cst_54 = arith.constant dense<0.000000e+00> : vector<8x256xf32>
    %156 = tpu.matmul %135, %9, %cst_54 {dimension_numbers = #tpu.dot_dimension_numbers<[1], [0], [0], [1], [0, 0, 1, 1], [], []>} : vector<8x64xf32>, vector<64x256xf32>, vector<8x256xf32> -> vector<8x256xf32>
    %157 = arith.addf %155, %156 : vector<8x256xf32>
    %158 = arith.negf %157 : vector<8x256xf32>
    %159 = math.exp %158 : vector<8x256xf32>
    %cst_55 = arith.constant 1.000000e+00 : f32
    %160 = vector.broadcast %cst_55 : f32 to vector<8x256xf32>
    %161 = arith.addf %160, %159 : vector<8x256xf32>
    %162 = arith.divf %160, %161 : vector<8x256xf32>
    %163 = math.tanh %157 : vector<8x256xf32>
    %164 = vector.extract_strided_slice %162 {offsets = [0, 0], sizes = [8, 32], strides = [1, 1]} : vector<8x256xf32> to vector<8x32xf32>
    %165 = vector.extract_strided_slice %162 {offsets = [0, 128], sizes = [8, 32], strides = [1, 1]} : vector<8x256xf32> to vector<8x32xf32>
    %166 = tpu.concatenate %164, %165 in 1 : vector<8x32xf32>, vector<8x32xf32> -> vector<8x64xf32>
    %167 = vector.extract_strided_slice %162 {offsets = [0, 32], sizes = [8, 32], strides = [1, 1]} : vector<8x256xf32> to vector<8x32xf32>
    %168 = vector.extract_strided_slice %162 {offsets = [0, 160], sizes = [8, 32], strides = [1, 1]} : vector<8x256xf32> to vector<8x32xf32>
    %169 = tpu.concatenate %167, %168 in 1 : vector<8x32xf32>, vector<8x32xf32> -> vector<8x64xf32>
    %170 = vector.extract_strided_slice %163 {offsets = [0, 64], sizes = [8, 32], strides = [1, 1]} : vector<8x256xf32> to vector<8x32xf32>
    %171 = vector.extract_strided_slice %163 {offsets = [0, 192], sizes = [8, 32], strides = [1, 1]} : vector<8x256xf32> to vector<8x32xf32>
    %172 = tpu.concatenate %170, %171 in 1 : vector<8x32xf32>, vector<8x32xf32> -> vector<8x64xf32>
    %173 = vector.extract_strided_slice %162 {offsets = [0, 96], sizes = [8, 32], strides = [1, 1]} : vector<8x256xf32> to vector<8x32xf32>
    %174 = vector.extract_strided_slice %162 {offsets = [0, 224], sizes = [8, 32], strides = [1, 1]} : vector<8x256xf32> to vector<8x32xf32>
    %175 = tpu.concatenate %173, %174 in 1 : vector<8x32xf32>, vector<8x32xf32> -> vector<8x64xf32>
    %176 = arith.mulf %169, %133 : vector<8x64xf32>
    %177 = arith.mulf %166, %172 : vector<8x64xf32>
    %178 = arith.addf %176, %177 : vector<8x64xf32>
    %179 = math.tanh %178 : vector<8x64xf32>
    %180 = arith.mulf %175, %179 : vector<8x64xf32>
    %181 = vector.extract_strided_slice %180 {offsets = [0, 0], sizes = [8, 32], strides = [1, 1]} : vector<8x64xf32> to vector<8x32xf32>
    %182 = arith.index_cast %c3_i32 : i32 to index
    %c0_56 = arith.constant 0 : index
    %c0_57 = arith.constant 0 : index
    %c0_58 = arith.constant 0 : index
    %183 = vector.load %arg4[%182, %c0_56, %c0_57, %c0_58] : memref<8x2x8x32xf32, #tpu.memory_space<vmem>>, vector<1x1x8x32xf32>
    %184 = vector.shape_cast %183 : vector<1x1x8x32xf32> to vector<8x32xf32>
    %185 = vector.shape_cast %181 : vector<8x32xf32> to vector<1x1x8x32xf32>
    tpu.vector_store %arg4[%182, %c0_56, %c0_57, %c0_58], %185 {strides = array<i32>} : memref<8x2x8x32xf32, #tpu.memory_space<vmem>>, vector<1x1x8x32xf32>,
    %186 = vector.extract_strided_slice %180 {offsets = [0, 32], sizes = [8, 32], strides = [1, 1]} : vector<8x64xf32> to vector<8x32xf32>
    %187 = arith.index_cast %146 : i32 to index
    %c1_59 = arith.constant 1 : index
    %c0_60 = arith.constant 0 : index
    %c0_61 = arith.constant 0 : index
    %188 = vector.load %arg4[%187, %c1_59, %c0_60, %c0_61] : memref<8x2x8x32xf32, #tpu.memory_space<vmem>>, vector<1x1x8x32xf32>
    %189 = vector.shape_cast %188 : vector<1x1x8x32xf32> to vector<8x32xf32>
    %190 = vector.shape_cast %186 : vector<8x32xf32> to vector<1x1x8x32xf32>
    tpu.vector_store %arg4[%187, %c1_59, %c0_60, %c0_61], %190 {strides = array<i32>} : memref<8x2x8x32xf32, #tpu.memory_space<vmem>>, vector<1x1x8x32xf32>,
    %c4_i32 = arith.constant 4 : i32
    %c7_i32_62 = arith.constant 7 : i32
    %191 = arith.subi %c7_i32_62, %c4_i32 : i32
    %192 = arith.index_cast %c4_i32 : i32 to index
    %c0_63 = arith.constant 0 : index
    %c0_64 = arith.constant 0 : index
    %193 = vector.load %arg5[%192, %c0_63, %c0_64] : memref<8x8x256xf32, #tpu.memory_space<vmem>>, vector<1x8x256xf32>
    %194 = vector.shape_cast %193 : vector<1x8x256xf32> to vector<8x256xf32>
    %195 = vector.extract_strided_slice %194 {offsets = [0, 0], sizes = [8, 128], strides = [1, 1]} : vector<8x256xf32> to vector<8x128xf32>
    %196 = arith.index_cast %191 : i32 to index
    %c0_65 = arith.constant 0 : index
    %c0_66 = arith.constant 0 : index
    %197 = vector.load %arg5[%196, %c0_65, %c0_66] : memref<8x8x256xf32, #tpu.memory_space<vmem>>, vector<1x8x256xf32>
    %198 = vector.shape_cast %197 : vector<1x8x256xf32> to vector<8x256xf32>
    %199 = vector.extract_strided_slice %198 {offsets = [0, 128], sizes = [8, 128], strides = [1, 1]} : vector<8x256xf32> to vector<8x128xf32>
    %200 = tpu.concatenate %195, %199 in 1 : vector<8x128xf32>, vector<8x128xf32> -> vector<8x256xf32>
    %cst_67 = arith.constant dense<0.000000e+00> : vector<8x256xf32>
    %201 = tpu.matmul %180, %9, %cst_67 {dimension_numbers = #tpu.dot_dimension_numbers<[1], [0], [0], [1], [0, 0, 1, 1], [], []>} : vector<8x64xf32>, vector<64x256xf32>, vector<8x256xf32> -> vector<8x256xf32>
    %202 = arith.addf %200, %201 : vector<8x256xf32>
    %203 = arith.negf %202 : vector<8x256xf32>
    %204 = math.exp %203 : vector<8x256xf32>
    %cst_68 = arith.constant 1.000000e+00 : f32
    %205 = vector.broadcast %cst_68 : f32 to vector<8x256xf32>
    %206 = arith.addf %205, %204 : vector<8x256xf32>
    %207 = arith.divf %205, %206 : vector<8x256xf32>
    %208 = math.tanh %202 : vector<8x256xf32>
    %209 = vector.extract_strided_slice %207 {offsets = [0, 0], sizes = [8, 32], strides = [1, 1]} : vector<8x256xf32> to vector<8x32xf32>
    %210 = vector.extract_strided_slice %207 {offsets = [0, 128], sizes = [8, 32], strides = [1, 1]} : vector<8x256xf32> to vector<8x32xf32>
    %211 = tpu.concatenate %209, %210 in 1 : vector<8x32xf32>, vector<8x32xf32> -> vector<8x64xf32>
    %212 = vector.extract_strided_slice %207 {offsets = [0, 32], sizes = [8, 32], strides = [1, 1]} : vector<8x256xf32> to vector<8x32xf32>
    %213 = vector.extract_strided_slice %207 {offsets = [0, 160], sizes = [8, 32], strides = [1, 1]} : vector<8x256xf32> to vector<8x32xf32>
    %214 = tpu.concatenate %212, %213 in 1 : vector<8x32xf32>, vector<8x32xf32> -> vector<8x64xf32>
    %215 = vector.extract_strided_slice %208 {offsets = [0, 64], sizes = [8, 32], strides = [1, 1]} : vector<8x256xf32> to vector<8x32xf32>
    %216 = vector.extract_strided_slice %208 {offsets = [0, 192], sizes = [8, 32], strides = [1, 1]} : vector<8x256xf32> to vector<8x32xf32>
    %217 = tpu.concatenate %215, %216 in 1 : vector<8x32xf32>, vector<8x32xf32> -> vector<8x64xf32>
    %218 = vector.extract_strided_slice %207 {offsets = [0, 96], sizes = [8, 32], strides = [1, 1]} : vector<8x256xf32> to vector<8x32xf32>
    %219 = vector.extract_strided_slice %207 {offsets = [0, 224], sizes = [8, 32], strides = [1, 1]} : vector<8x256xf32> to vector<8x32xf32>
    %220 = tpu.concatenate %218, %219 in 1 : vector<8x32xf32>, vector<8x32xf32> -> vector<8x64xf32>
    %221 = arith.mulf %214, %178 : vector<8x64xf32>
    %222 = arith.mulf %211, %217 : vector<8x64xf32>
    %223 = arith.addf %221, %222 : vector<8x64xf32>
    %224 = math.tanh %223 : vector<8x64xf32>
    %225 = arith.mulf %220, %224 : vector<8x64xf32>
    %226 = vector.extract_strided_slice %225 {offsets = [0, 0], sizes = [8, 32], strides = [1, 1]} : vector<8x64xf32> to vector<8x32xf32>
    %227 = arith.index_cast %c4_i32 : i32 to index
    %c0_69 = arith.constant 0 : index
    %c0_70 = arith.constant 0 : index
    %c0_71 = arith.constant 0 : index
    %228 = vector.load %arg4[%227, %c0_69, %c0_70, %c0_71] : memref<8x2x8x32xf32, #tpu.memory_space<vmem>>, vector<1x1x8x32xf32>
    %229 = vector.shape_cast %228 : vector<1x1x8x32xf32> to vector<8x32xf32>
    %230 = vector.shape_cast %226 : vector<8x32xf32> to vector<1x1x8x32xf32>
    tpu.vector_store %arg4[%227, %c0_69, %c0_70, %c0_71], %230 {strides = array<i32>} : memref<8x2x8x32xf32, #tpu.memory_space<vmem>>, vector<1x1x8x32xf32>,
    %231 = vector.extract_strided_slice %225 {offsets = [0, 32], sizes = [8, 32], strides = [1, 1]} : vector<8x64xf32> to vector<8x32xf32>
    %232 = arith.index_cast %191 : i32 to index
    %c1_72 = arith.constant 1 : index
    %c0_73 = arith.constant 0 : index
    %c0_74 = arith.constant 0 : index
    %233 = vector.load %arg4[%232, %c1_72, %c0_73, %c0_74] : memref<8x2x8x32xf32, #tpu.memory_space<vmem>>, vector<1x1x8x32xf32>
    %234 = vector.shape_cast %233 : vector<1x1x8x32xf32> to vector<8x32xf32>
    %235 = vector.shape_cast %231 : vector<8x32xf32> to vector<1x1x8x32xf32>
    tpu.vector_store %arg4[%232, %c1_72, %c0_73, %c0_74], %235 {strides = array<i32>} : memref<8x2x8x32xf32, #tpu.memory_space<vmem>>, vector<1x1x8x32xf32>,
    %c5_i32 = arith.constant 5 : i32
    %c7_i32_75 = arith.constant 7 : i32
    %236 = arith.subi %c7_i32_75, %c5_i32 : i32
    %237 = arith.index_cast %c5_i32 : i32 to index
    %c0_76 = arith.constant 0 : index
    %c0_77 = arith.constant 0 : index
    %238 = vector.load %arg5[%237, %c0_76, %c0_77] : memref<8x8x256xf32, #tpu.memory_space<vmem>>, vector<1x8x256xf32>
    %239 = vector.shape_cast %238 : vector<1x8x256xf32> to vector<8x256xf32>
    %240 = vector.extract_strided_slice %239 {offsets = [0, 0], sizes = [8, 128], strides = [1, 1]} : vector<8x256xf32> to vector<8x128xf32>
    %241 = arith.index_cast %236 : i32 to index
    %c0_78 = arith.constant 0 : index
    %c0_79 = arith.constant 0 : index
    %242 = vector.load %arg5[%241, %c0_78, %c0_79] : memref<8x8x256xf32, #tpu.memory_space<vmem>>, vector<1x8x256xf32>
    %243 = vector.shape_cast %242 : vector<1x8x256xf32> to vector<8x256xf32>
    %244 = vector.extract_strided_slice %243 {offsets = [0, 128], sizes = [8, 128], strides = [1, 1]} : vector<8x256xf32> to vector<8x128xf32>
    %245 = tpu.concatenate %240, %244 in 1 : vector<8x128xf32>, vector<8x128xf32> -> vector<8x256xf32>
    %cst_80 = arith.constant dense<0.000000e+00> : vector<8x256xf32>
    %246 = tpu.matmul %225, %9, %cst_80 {dimension_numbers = #tpu.dot_dimension_numbers<[1], [0], [0], [1], [0, 0, 1, 1], [], []>} : vector<8x64xf32>, vector<64x256xf32>, vector<8x256xf32> -> vector<8x256xf32>
    %247 = arith.addf %245, %246 : vector<8x256xf32>
    %248 = arith.negf %247 : vector<8x256xf32>
    %249 = math.exp %248 : vector<8x256xf32>
    %cst_81 = arith.constant 1.000000e+00 : f32
    %250 = vector.broadcast %cst_81 : f32 to vector<8x256xf32>
    %251 = arith.addf %250, %249 : vector<8x256xf32>
    %252 = arith.divf %250, %251 : vector<8x256xf32>
    %253 = math.tanh %247 : vector<8x256xf32>
    %254 = vector.extract_strided_slice %252 {offsets = [0, 0], sizes = [8, 32], strides = [1, 1]} : vector<8x256xf32> to vector<8x32xf32>
    %255 = vector.extract_strided_slice %252 {offsets = [0, 128], sizes = [8, 32], strides = [1, 1]} : vector<8x256xf32> to vector<8x32xf32>
    %256 = tpu.concatenate %254, %255 in 1 : vector<8x32xf32>, vector<8x32xf32> -> vector<8x64xf32>
    %257 = vector.extract_strided_slice %252 {offsets = [0, 32], sizes = [8, 32], strides = [1, 1]} : vector<8x256xf32> to vector<8x32xf32>
    %258 = vector.extract_strided_slice %252 {offsets = [0, 160], sizes = [8, 32], strides = [1, 1]} : vector<8x256xf32> to vector<8x32xf32>
    %259 = tpu.concatenate %257, %258 in 1 : vector<8x32xf32>, vector<8x32xf32> -> vector<8x64xf32>
    %260 = vector.extract_strided_slice %253 {offsets = [0, 64], sizes = [8, 32], strides = [1, 1]} : vector<8x256xf32> to vector<8x32xf32>
    %261 = vector.extract_strided_slice %253 {offsets = [0, 192], sizes = [8, 32], strides = [1, 1]} : vector<8x256xf32> to vector<8x32xf32>
    %262 = tpu.concatenate %260, %261 in 1 : vector<8x32xf32>, vector<8x32xf32> -> vector<8x64xf32>
    %263 = vector.extract_strided_slice %252 {offsets = [0, 96], sizes = [8, 32], strides = [1, 1]} : vector<8x256xf32> to vector<8x32xf32>
    %264 = vector.extract_strided_slice %252 {offsets = [0, 224], sizes = [8, 32], strides = [1, 1]} : vector<8x256xf32> to vector<8x32xf32>
    %265 = tpu.concatenate %263, %264 in 1 : vector<8x32xf32>, vector<8x32xf32> -> vector<8x64xf32>
    %266 = arith.mulf %259, %223 : vector<8x64xf32>
    %267 = arith.mulf %256, %262 : vector<8x64xf32>
    %268 = arith.addf %266, %267 : vector<8x64xf32>
    %269 = math.tanh %268 : vector<8x64xf32>
    %270 = arith.mulf %265, %269 : vector<8x64xf32>
    %271 = vector.extract_strided_slice %270 {offsets = [0, 0], sizes = [8, 32], strides = [1, 1]} : vector<8x64xf32> to vector<8x32xf32>
    %272 = arith.index_cast %c5_i32 : i32 to index
    %c0_82 = arith.constant 0 : index
    %c0_83 = arith.constant 0 : index
    %c0_84 = arith.constant 0 : index
    %273 = vector.load %arg4[%272, %c0_82, %c0_83, %c0_84] : memref<8x2x8x32xf32, #tpu.memory_space<vmem>>, vector<1x1x8x32xf32>
    %274 = vector.shape_cast %273 : vector<1x1x8x32xf32> to vector<8x32xf32>
    %275 = vector.shape_cast %271 : vector<8x32xf32> to vector<1x1x8x32xf32>
    tpu.vector_store %arg4[%272, %c0_82, %c0_83, %c0_84], %275 {strides = array<i32>} : memref<8x2x8x32xf32, #tpu.memory_space<vmem>>, vector<1x1x8x32xf32>,
    %276 = vector.extract_strided_slice %270 {offsets = [0, 32], sizes = [8, 32], strides = [1, 1]} : vector<8x64xf32> to vector<8x32xf32>
    %277 = arith.index_cast %236 : i32 to index
    %c1_85 = arith.constant 1 : index
    %c0_86 = arith.constant 0 : index
    %c0_87 = arith.constant 0 : index
    %278 = vector.load %arg4[%277, %c1_85, %c0_86, %c0_87] : memref<8x2x8x32xf32, #tpu.memory_space<vmem>>, vector<1x1x8x32xf32>
    %279 = vector.shape_cast %278 : vector<1x1x8x32xf32> to vector<8x32xf32>
    %280 = vector.shape_cast %276 : vector<8x32xf32> to vector<1x1x8x32xf32>
    tpu.vector_store %arg4[%277, %c1_85, %c0_86, %c0_87], %280 {strides = array<i32>} : memref<8x2x8x32xf32, #tpu.memory_space<vmem>>, vector<1x1x8x32xf32>,
    %c6_i32 = arith.constant 6 : i32
    %c7_i32_88 = arith.constant 7 : i32
    %281 = arith.subi %c7_i32_88, %c6_i32 : i32
    %282 = arith.index_cast %c6_i32 : i32 to index
    %c0_89 = arith.constant 0 : index
    %c0_90 = arith.constant 0 : index
    %283 = vector.load %arg5[%282, %c0_89, %c0_90] : memref<8x8x256xf32, #tpu.memory_space<vmem>>, vector<1x8x256xf32>
    %284 = vector.shape_cast %283 : vector<1x8x256xf32> to vector<8x256xf32>
    %285 = vector.extract_strided_slice %284 {offsets = [0, 0], sizes = [8, 128], strides = [1, 1]} : vector<8x256xf32> to vector<8x128xf32>
    %286 = arith.index_cast %281 : i32 to index
    %c0_91 = arith.constant 0 : index
    %c0_92 = arith.constant 0 : index
    %287 = vector.load %arg5[%286, %c0_91, %c0_92] : memref<8x8x256xf32, #tpu.memory_space<vmem>>, vector<1x8x256xf32>
    %288 = vector.shape_cast %287 : vector<1x8x256xf32> to vector<8x256xf32>
    %289 = vector.extract_strided_slice %288 {offsets = [0, 128], sizes = [8, 128], strides = [1, 1]} : vector<8x256xf32> to vector<8x128xf32>
    %290 = tpu.concatenate %285, %289 in 1 : vector<8x128xf32>, vector<8x128xf32> -> vector<8x256xf32>
    %cst_93 = arith.constant dense<0.000000e+00> : vector<8x256xf32>
    %291 = tpu.matmul %270, %9, %cst_93 {dimension_numbers = #tpu.dot_dimension_numbers<[1], [0], [0], [1], [0, 0, 1, 1], [], []>} : vector<8x64xf32>, vector<64x256xf32>, vector<8x256xf32> -> vector<8x256xf32>
    %292 = arith.addf %290, %291 : vector<8x256xf32>
    %293 = arith.negf %292 : vector<8x256xf32>
    %294 = math.exp %293 : vector<8x256xf32>
    %cst_94 = arith.constant 1.000000e+00 : f32
    %295 = vector.broadcast %cst_94 : f32 to vector<8x256xf32>
    %296 = arith.addf %295, %294 : vector<8x256xf32>
    %297 = arith.divf %295, %296 : vector<8x256xf32>
    %298 = math.tanh %292 : vector<8x256xf32>
    %299 = vector.extract_strided_slice %297 {offsets = [0, 0], sizes = [8, 32], strides = [1, 1]} : vector<8x256xf32> to vector<8x32xf32>
    %300 = vector.extract_strided_slice %297 {offsets = [0, 128], sizes = [8, 32], strides = [1, 1]} : vector<8x256xf32> to vector<8x32xf32>
    %301 = tpu.concatenate %299, %300 in 1 : vector<8x32xf32>, vector<8x32xf32> -> vector<8x64xf32>
    %302 = vector.extract_strided_slice %297 {offsets = [0, 32], sizes = [8, 32], strides = [1, 1]} : vector<8x256xf32> to vector<8x32xf32>
    %303 = vector.extract_strided_slice %297 {offsets = [0, 160], sizes = [8, 32], strides = [1, 1]} : vector<8x256xf32> to vector<8x32xf32>
    %304 = tpu.concatenate %302, %303 in 1 : vector<8x32xf32>, vector<8x32xf32> -> vector<8x64xf32>
    %305 = vector.extract_strided_slice %298 {offsets = [0, 64], sizes = [8, 32], strides = [1, 1]} : vector<8x256xf32> to vector<8x32xf32>
    %306 = vector.extract_strided_slice %298 {offsets = [0, 192], sizes = [8, 32], strides = [1, 1]} : vector<8x256xf32> to vector<8x32xf32>
    %307 = tpu.concatenate %305, %306 in 1 : vector<8x32xf32>, vector<8x32xf32> -> vector<8x64xf32>
    %308 = vector.extract_strided_slice %297 {offsets = [0, 96], sizes = [8, 32], strides = [1, 1]} : vector<8x256xf32> to vector<8x32xf32>
    %309 = vector.extract_strided_slice %297 {offsets = [0, 224], sizes = [8, 32], strides = [1, 1]} : vector<8x256xf32> to vector<8x32xf32>
    %310 = tpu.concatenate %308, %309 in 1 : vector<8x32xf32>, vector<8x32xf32> -> vector<8x64xf32>
    %311 = arith.mulf %304, %268 : vector<8x64xf32>
    %312 = arith.mulf %301, %307 : vector<8x64xf32>
    %313 = arith.addf %311, %312 : vector<8x64xf32>
    %314 = math.tanh %313 : vector<8x64xf32>
    %315 = arith.mulf %310, %314 : vector<8x64xf32>
    %316 = vector.extract_strided_slice %315 {offsets = [0, 0], sizes = [8, 32], strides = [1, 1]} : vector<8x64xf32> to vector<8x32xf32>
    %317 = arith.index_cast %c6_i32 : i32 to index
    %c0_95 = arith.constant 0 : index
    %c0_96 = arith.constant 0 : index
    %c0_97 = arith.constant 0 : index
    %318 = vector.load %arg4[%317, %c0_95, %c0_96, %c0_97] : memref<8x2x8x32xf32, #tpu.memory_space<vmem>>, vector<1x1x8x32xf32>
    %319 = vector.shape_cast %318 : vector<1x1x8x32xf32> to vector<8x32xf32>
    %320 = vector.shape_cast %316 : vector<8x32xf32> to vector<1x1x8x32xf32>
    tpu.vector_store %arg4[%317, %c0_95, %c0_96, %c0_97], %320 {strides = array<i32>} : memref<8x2x8x32xf32, #tpu.memory_space<vmem>>, vector<1x1x8x32xf32>,
    %321 = vector.extract_strided_slice %315 {offsets = [0, 32], sizes = [8, 32], strides = [1, 1]} : vector<8x64xf32> to vector<8x32xf32>
    %322 = arith.index_cast %281 : i32 to index
    %c1_98 = arith.constant 1 : index
    %c0_99 = arith.constant 0 : index
    %c0_100 = arith.constant 0 : index
    %323 = vector.load %arg4[%322, %c1_98, %c0_99, %c0_100] : memref<8x2x8x32xf32, #tpu.memory_space<vmem>>, vector<1x1x8x32xf32>
    %324 = vector.shape_cast %323 : vector<1x1x8x32xf32> to vector<8x32xf32>
    %325 = vector.shape_cast %321 : vector<8x32xf32> to vector<1x1x8x32xf32>
    tpu.vector_store %arg4[%322, %c1_98, %c0_99, %c0_100], %325 {strides = array<i32>} : memref<8x2x8x32xf32, #tpu.memory_space<vmem>>, vector<1x1x8x32xf32>,
    %c7_i32_101 = arith.constant 7 : i32
    %c7_i32_102 = arith.constant 7 : i32
    %326 = arith.subi %c7_i32_102, %c7_i32_101 : i32
    %327 = arith.index_cast %c7_i32_101 : i32 to index
    %c0_103 = arith.constant 0 : index
    %c0_104 = arith.constant 0 : index
    %328 = vector.load %arg5[%327, %c0_103, %c0_104] : memref<8x8x256xf32, #tpu.memory_space<vmem>>, vector<1x8x256xf32>
    %329 = vector.shape_cast %328 : vector<1x8x256xf32> to vector<8x256xf32>
    %330 = vector.extract_strided_slice %329 {offsets = [0, 0], sizes = [8, 128], strides = [1, 1]} : vector<8x256xf32> to vector<8x128xf32>
    %331 = arith.index_cast %326 : i32 to index
    %c0_105 = arith.constant 0 : index
    %c0_106 = arith.constant 0 : index
    %332 = vector.load %arg5[%331, %c0_105, %c0_106] : memref<8x8x256xf32, #tpu.memory_space<vmem>>, vector<1x8x256xf32>
    %333 = vector.shape_cast %332 : vector<1x8x256xf32> to vector<8x256xf32>
    %334 = vector.extract_strided_slice %333 {offsets = [0, 128], sizes = [8, 128], strides = [1, 1]} : vector<8x256xf32> to vector<8x128xf32>
    %335 = tpu.concatenate %330, %334 in 1 : vector<8x128xf32>, vector<8x128xf32> -> vector<8x256xf32>
    %cst_107 = arith.constant dense<0.000000e+00> : vector<8x256xf32>
    %336 = tpu.matmul %315, %9, %cst_107 {dimension_numbers = #tpu.dot_dimension_numbers<[1], [0], [0], [1], [0, 0, 1, 1], [], []>} : vector<8x64xf32>, vector<64x256xf32>, vector<8x256xf32> -> vector<8x256xf32>
    %337 = arith.addf %335, %336 : vector<8x256xf32>
    %338 = arith.negf %337 : vector<8x256xf32>
    %339 = math.exp %338 : vector<8x256xf32>
    %cst_108 = arith.constant 1.000000e+00 : f32
    %340 = vector.broadcast %cst_108 : f32 to vector<8x256xf32>
    %341 = arith.addf %340, %339 : vector<8x256xf32>
    %342 = arith.divf %340, %341 : vector<8x256xf32>
    %343 = math.tanh %337 : vector<8x256xf32>
    %344 = vector.extract_strided_slice %342 {offsets = [0, 0], sizes = [8, 32], strides = [1, 1]} : vector<8x256xf32> to vector<8x32xf32>
    %345 = vector.extract_strided_slice %342 {offsets = [0, 128], sizes = [8, 32], strides = [1, 1]} : vector<8x256xf32> to vector<8x32xf32>
    %346 = tpu.concatenate %344, %345 in 1 : vector<8x32xf32>, vector<8x32xf32> -> vector<8x64xf32>
    %347 = vector.extract_strided_slice %342 {offsets = [0, 32], sizes = [8, 32], strides = [1, 1]} : vector<8x256xf32> to vector<8x32xf32>
    %348 = vector.extract_strided_slice %342 {offsets = [0, 160], sizes = [8, 32], strides = [1, 1]} : vector<8x256xf32> to vector<8x32xf32>
    %349 = tpu.concatenate %347, %348 in 1 : vector<8x32xf32>, vector<8x32xf32> -> vector<8x64xf32>
    %350 = vector.extract_strided_slice %343 {offsets = [0, 64], sizes = [8, 32], strides = [1, 1]} : vector<8x256xf32> to vector<8x32xf32>
    %351 = vector.extract_strided_slice %343 {offsets = [0, 192], sizes = [8, 32], strides = [1, 1]} : vector<8x256xf32> to vector<8x32xf32>
    %352 = tpu.concatenate %350, %351 in 1 : vector<8x32xf32>, vector<8x32xf32> -> vector<8x64xf32>
    %353 = vector.extract_strided_slice %342 {offsets = [0, 96], sizes = [8, 32], strides = [1, 1]} : vector<8x256xf32> to vector<8x32xf32>
    %354 = vector.extract_strided_slice %342 {offsets = [0, 224], sizes = [8, 32], strides = [1, 1]} : vector<8x256xf32> to vector<8x32xf32>
    %355 = tpu.concatenate %353, %354 in 1 : vector<8x32xf32>, vector<8x32xf32> -> vector<8x64xf32>
    %356 = arith.mulf %349, %313 : vector<8x64xf32>
    %357 = arith.mulf %346, %352 : vector<8x64xf32>
    %358 = arith.addf %356, %357 : vector<8x64xf32>
    %359 = math.tanh %358 : vector<8x64xf32>
    %360 = arith.mulf %355, %359 : vector<8x64xf32>
    %361 = vector.extract_strided_slice %360 {offsets = [0, 0], sizes = [8, 32], strides = [1, 1]} : vector<8x64xf32> to vector<8x32xf32>
    %362 = arith.index_cast %c7_i32_101 : i32 to index
    %c0_109 = arith.constant 0 : index
    %c0_110 = arith.constant 0 : index
    %c0_111 = arith.constant 0 : index
    %363 = vector.load %arg4[%362, %c0_109, %c0_110, %c0_111] : memref<8x2x8x32xf32, #tpu.memory_space<vmem>>, vector<1x1x8x32xf32>
    %364 = vector.shape_cast %363 : vector<1x1x8x32xf32> to vector<8x32xf32>
    %365 = vector.shape_cast %361 : vector<8x32xf32> to vector<1x1x8x32xf32>
    tpu.vector_store %arg4[%362, %c0_109, %c0_110, %c0_111], %365 {strides = array<i32>} : memref<8x2x8x32xf32, #tpu.memory_space<vmem>>, vector<1x1x8x32xf32>,
    %366 = vector.extract_strided_slice %360 {offsets = [0, 32], sizes = [8, 32], strides = [1, 1]} : vector<8x64xf32> to vector<8x32xf32>
    %367 = arith.index_cast %326 : i32 to index
    %c1_112 = arith.constant 1 : index
    %c0_113 = arith.constant 0 : index
    %c0_114 = arith.constant 0 : index
    %368 = vector.load %arg4[%367, %c1_112, %c0_113, %c0_114] : memref<8x2x8x32xf32, #tpu.memory_space<vmem>>, vector<1x1x8x32xf32>
    %369 = vector.shape_cast %368 : vector<1x1x8x32xf32> to vector<8x32xf32>
    %370 = vector.shape_cast %366 : vector<8x32xf32> to vector<1x1x8x32xf32>
    tpu.vector_store %arg4[%367, %c1_112, %c0_113, %c0_114], %370 {strides = array<i32>} : memref<8x2x8x32xf32, #tpu.memory_space<vmem>>, vector<1x1x8x32xf32>,
    %c8_i32 = arith.constant 8 : i32
    return
  }
}

</mosaic_0001>

<llo_original>
// kernel: tpu_custom_call.1
$region0: #{tpu_custom_call.1}
  #allocation0 [shape = 'u32[]', space=smem, size = 0x4, offset = 0x4, fixed_abs, tag = 'smem constant byte address 0x4 - core index']
  #allocation1 [shape = 'u32[144,128]{1,0:T(1,128)}', space=vmem, size = 0x12000, scoped, tag = 'internal scratch']
  #allocation2 [shape = 'f32[8,8,256]{2,1,0:T(8,128)}', space=vmem, size = 0x10000, scoped, tag = 'scratch operand']
  %s0 = inlined_call_operand.hbm [shape: f32[8,8,32], index: 0, kind: input, shape index: {}]
  %s1 = inlined_call_operand.hbm [shape: f32[32,256], index: 1, kind: input, shape index: {}]
  %s2 = inlined_call_operand.hbm [shape: f32[64,256], index: 2, kind: input, shape index: {}]
  %s3 = inlined_call_operand.vmem [shape: f32[1,256], index: 3, kind: input, shape index: {}]
  %s4 = inlined_call_operand.hbm [shape: f32[8,2,8,32], index: 4, kind: output, shape index: {}]
  %s5 = sld [smem:[#allocation0]]
  $region38: #{tpu_custom_call.1} parent=0
    _
  %s7 = ssub.s32 1, %s5
  %s8 = scalar_select 0, %s7, %s5
  $region1: #{tpu_custom_call.1} parent=0
    #allocation3 [shape = 'u8[32768]{0}', space=vmem, size = 0x8000, scoped, tag = 'input window, operand 0, single buffered']
    #allocation4 [shape = 's32[1]{0}', space=sflag, size = 0x4, scoped, tag = 'scoped memory for tpu_custom_call.1']
    #allocation5 [shape = 's32[1]{0}', space=sflag, size = 0x4, scoped, tag = 'scoped memory for tpu_custom_call.1']
    #allocation6 [shape = 'u8[32768]{0}', space=vmem, size = 0x8000, scoped, tag = 'input window, operand 1, single buffered']
    #allocation7 [shape = 's32[1]{0}', space=sflag, size = 0x4, scoped, tag = 'scoped memory for tpu_custom_call.1']
    #allocation8 [shape = 'u8[65536]{0}', space=vmem, size = 0x10000, scoped, tag = 'input window, operand 2, single buffered']
    #allocation9 [shape = 'u8[65536]{0}', space=vmem, size = 0x10000, scoped, tag = 'output window, operand 0, single buffered']
    %9 = vsyncpa [#allocation4], 0
    %10 = vsyncpa [#allocation7], 0
    %11 = vsyncpa [#allocation5], 0
    // Predicated region
    $region2: #{tpu_custom_call.1} parent=1 // pred_check
      _
    $region3: #{tpu_custom_call.1} parent=1 // pred_check_branch
      %13 = sbr.rel (0) target = $region5
    $region4: #{tpu_custom_call.1} parent=1 // pred_region
      %s15 = ssub.s32 1024, 1024
      %16 = vsyncadd [#allocation4], %s15
      %s17 = sshll.u32 [#allocation3], 4
      %s18 = int_to_ptr.vmem [resolvable:$true] %s17
      %23 = dma.hbm_to_vmem [thread:$0]  %s0, 1024, %s18, [#allocation4], 128, 128, 8
    $region5: #{tpu_custom_call.1} parent=1 // pred_fallthru
      _
    // Predicated region
    $region6: #{tpu_custom_call.1} parent=1 // pred_check
      _
    $region7: #{tpu_custom_call.1} parent=1 // pred_check_branch
      %25 = sbr.rel (0) target = $region9
    $region8: #{tpu_custom_call.1} parent=1 // pred_region
      %s27 = ssub.s32 1024, 1024
      %28 = vsyncadd [#allocation7], %s27
      %s29 = sshll.u32 [#allocation6], 4
      %s30 = int_to_ptr.vmem [resolvable:$true] %s29
      %35 = dma.hbm_to_vmem [thread:$0]  %s1, 1024, %s30, [#allocation7], 256, 256, 16
    $region9: #{tpu_custom_call.1} parent=1 // pred_fallthru
      _
    // Predicated region
    $region10: #{tpu_custom_call.1} parent=1 // pred_check
      _
    $region11: #{tpu_custom_call.1} parent=1 // pred_check_branch
      %37 = sbr.rel (0) target = $region13
    $region12: #{tpu_custom_call.1} parent=1 // pred_region
      %s39 = ssub.s32 2048, 2048
      %40 = vsyncadd [#allocation7], %s39
      %s41 = sshll.u32 [#allocation8], 4
      %s42 = int_to_ptr.vmem [resolvable:$true] %s41
      %47 = dma.hbm_to_vmem [thread:$0]  %s2, 2048, %s42, [#allocation7], 256, 256, 16
    $region13: #{tpu_custom_call.1} parent=1 // pred_fallthru
      _
    // Predicated region
    $region14: #{tpu_custom_call.1} parent=1 // pred_check
      _
    $region15: #{tpu_custom_call.1} parent=1 // pred_check_branch
      %49 = sbr.rel (0) target = $region17
    $region16: #{tpu_custom_call.1} parent=1 // pred_region
      _
    $region17: #{tpu_custom_call.1} parent=1 // pred_fallthru
      _
    // Predicated region
    $region18: #{tpu_custom_call.1} parent=1 // pred_check
      _
    $region19: #{tpu_custom_call.1} parent=1 // pred_check_branch
      %51 = sbr.rel (0) target = $region21
    $region20: #{tpu_custom_call.1} parent=1 // pred_region
      %52 = dma.done [#allocation4], 1024
    $region21: #{tpu_custom_call.1} parent=1 // pred_fallthru
      _
    // Predicated region
    $region22: #{tpu_custom_call.1} parent=1 // pred_check
      _
    $region23: #{tpu_custom_call.1} parent=1 // pred_check_branch
      %54 = sbr.rel (0) target = $region25
    $region24: #{tpu_custom_call.1} parent=1 // pred_region
      %55 = dma.done [#allocation7], 1024
    $region25: #{tpu_custom_call.1} parent=1 // pred_fallthru
      _
    // Predicated region
    $region26: #{tpu_custom_call.1} parent=1 // pred_check
      _
    $region27: #{tpu_custom_call.1} parent=1 // pred_check_branch
      %57 = sbr.rel (0) target = $region29
    $region28: #{tpu_custom_call.1} parent=1 // pred_region
      %58 = dma.done [#allocation7], 2048
    $region29: #{tpu_custom_call.1} parent=1 // pred_fallthru
      _
    %v59 = vld [vmem:[#allocation6] sm:$0xff]
    %v60 = vld [vmem:[#allocation6 + $0x8] sm:$0xff]
    %v61 = vld [vmem:[#allocation6 + $0x10] sm:$0xff]
    %v62 = vld [vmem:[#allocation6 + $0x18] sm:$0xff]
    %v63 = vld [vmem:[#allocation6 + $0x20] sm:$0xff]
    %v64 = vld [vmem:[#allocation6 + $0x28] sm:$0xff]
    %v65 = vld [vmem:[#allocation6 + $0x30] sm:$0xff]
    %v66 = vld [vmem:[#allocation6 + $0x38] sm:$0xff]
    %v67 = vld [vmem:[%s3] sm:$0x3]
    %v68 = vld [vmem:[#allocation3] sm:$0xff]
    %v69 = vld [vmem:[#allocation3 + $0x8] sm:$0xff]
    %v70 = vld [vmem:[#allocation3 + $0x10] sm:$0xff]
    %v71 = vld [vmem:[#allocation3 + $0x18] sm:$0xff]
    %v72 = vld [vmem:[#allocation3 + $0x20] sm:$0xff]
    %v73 = vld [vmem:[#allocation3 + $0x28] sm:$0xff]
    %v74 = vld [vmem:[#allocation3 + $0x30] sm:$0xff]
    %v75 = vld [vmem:[#allocation3 + $0x38] sm:$0xff]
    %v77 = vlaneseq
    %v78 = vshrl.u32 %v77, 7
    %v79 = vsub.s32 0, %v78
    %v80 = vrot.slane %v67, %v79
    %v81 = vlaneseq
    %v82 = vshrl.u32 %v81, 7
    %v83 = vsub.s32 1, %v82
    %v84 = vrot.slane %v67, %v83
    %vm87 = vcmask 261120
    %v89 = vsel %vm87, %v68, 0
    %v92 = vsel %vm87, %v69, 0
    %v95 = vsel %vm87, %v70, 0
    %v98 = vsel %vm87, %v71, 0
    %v101 = vsel %vm87, %v72, 0
    %v104 = vsel %vm87, %v73, 0
    %v107 = vsel %vm87, %v74, 0
    %v110 = vsel %vm87, %v75, 0
    %112 = vmatprep.subr.mxu0 0.0
    %113 = vmatpush1.msra.mxu0 0.0
    %114 = vmatprep.subr.mxu0 0.0
    %115 = vmatpush1.msra.mxu0 0.0
    %116 = vmatprep.subr.mxu0 0.0
    %117 = vmatpush1.msra.mxu0 0.0
    %118 = vmatprep.subr.mxu0 0.0
    %119 = vmatpush1.msra.mxu0 0.0
    %120 = vmatprep.subr.mxu0 0.0
    %121 = vmatpush1.msra.mxu0 0.0
    %122 = vmatprep.subr.mxu0 0.0
    %123 = vmatpush1.msra.mxu0 0.0
    %124 = vmatprep.subr.mxu0 0.0
    %125 = vmatpush1.msra.mxu0 0.0
    %126 = vmatprep.subr.mxu0 0.0
    %127 = vmatpush1.msra.mxu0 0.0
    %128 = vmatprep.subr.mxu0 0.0
    %129 = vmatpush1.msra.mxu0 0.0
    %130 = vmatprep.subr.mxu0 0.0
    %131 = vmatpush1.msra.mxu0 0.0
    %132 = vmatprep.subr.mxu0 0.0
    %133 = vmatpush1.msra.mxu0 0.0
    %134 = vmatprep.subr.mxu0 0.0
    %135 = vmatpush1.msra.mxu0 0.0
    %136 = vmatprep.subr.mxu0 %v66
    %137 = vmatpush1.msra.mxu0 %v65
    %138 = vmatprep.subr.mxu0 %v64
    %139 = vmatpush1.msra.mxu0 %v63
    %140 = vmatprep.subr.mxu0 %v62
    %141 = vmatpush1.msra.mxu0 %v61
    %142 = vmatprep.subr.mxu0 %v60
    %143 = vmatpush1.msra.mxu0 %v59
    %144 = vmatprep.subr.mxu0 0.0
    %145 = vmatpush2.msra.mxu0 0.0
    %146 = vmatprep.subr.mxu0 0.0
    %147 = vmatpush2.msra.mxu0 0.0
    %148 = vmatprep.subr.mxu0 0.0
    %149 = vmatpush2.msra.mxu0 0.0
    %150 = vmatprep.subr.mxu0 0.0
    %151 = vmatpush2.msra.mxu0 0.0
    %152 = vmatprep.subr.mxu0 0.0
    %153 = vmatpush2.msra.mxu0 0.0
    %154 = vmatprep.subr.mxu0 0.0
    %155 = vmatpush2.msra.mxu0 0.0
    %156 = vmatprep.subr.mxu0 0.0
    %157 = vmatpush2.msra.mxu0 0.0
    %158 = vmatprep.subr.mxu0 0.0
    %159 = vmatpush2.msra.mxu0 0.0
    %160 = vmatprep.subr.mxu0 0.0
    %161 = vmatpush2.msra.mxu0 0.0
    %162 = vmatprep.subr.mxu0 0.0
    %163 = vmatpush2.msra.mxu0 0.0
    %164 = vmatprep.subr.mxu0 0.0
    %165 = vmatpush2.msra.mxu0 0.0
    %166 = vmatprep.subr.mxu0 0.0
    %167 = vmatpush2.msra.mxu0 0.0
    %168 = vmatprep.subr.mxu0 0.0
    %169 = vmatpush2.msra.mxu0 0.0
    %170 = vmatprep.subr.mxu0 0.0
    %171 = vmatpush2.msra.mxu0 0.0
    %172 = vmatprep.subr.mxu0 0.0
    %173 = vmatpush2.msra.mxu0 0.0
    %174 = vmatprep.subr.mxu0 0.0
    %175 = vmatpush2.msra.mxu0 0.0
    %176 = vmatprep.mubr.f32.mxu0 0.0
    %177 = vmatmul.mubr.f32.gmra.mxu0 %v89
    %v178 = vpop.f32.mrf.mxu0
    %v179 = vadd.f32 %v80, %v178
    %v180 = vpop.f32.mrf.mxu0
    %v181 = vadd.f32 %v84, %v180
    %182 = vmatprep.mubr.f32.mxu0 0.0
    %183 = vmatmul.mubr.f32.gmra.mxu0 %v92
    %v184 = vpop.f32.mrf.mxu0
    %v185 = vadd.f32 %v80, %v184
    %v186 = vpop.f32.mrf.mxu0
    %v187 = vadd.f32 %v84, %v186
    %188 = vmatprep.mubr.f32.mxu0 0.0
    %189 = vmatmul.mubr.f32.gmra.mxu0 %v95
    %v190 = vpop.f32.mrf.mxu0
    %v191 = vadd.f32 %v80, %v190
    %v192 = vpop.f32.mrf.mxu0
    %v193 = vadd.f32 %v84, %v192
    %194 = vmatprep.mubr.f32.mxu0 0.0
    %195 = vmatmul.mubr.f32.gmra.mxu0 %v98
    %v196 = vpop.f32.mrf.mxu0
    %v197 = vadd.f32 %v80, %v196
    %v198 = vpop.f32.mrf.mxu0
    %v199 = vadd.f32 %v84, %v198
    %200 = vmatprep.mubr.f32.mxu0 0.0
    %201 = vmatmul.mubr.f32.gmra.mxu0 %v101
    %v202 = vpop.f32.mrf.mxu0
    %v203 = vadd.f32 %v80, %v202
    %v204 = vpop.f32.mrf.mxu0
    %v205 = vadd.f32 %v84, %v204
    %206 = vmatprep.mubr.f32.mxu0 0.0
    %207 = vmatmul.mubr.f32.gmra.mxu0 %v104
    %v208 = vpop.f32.mrf.mxu0
    %v209 = vadd.f32 %v80, %v208
    %v210 = vpop.f32.mrf.mxu0
    %v211 = vadd.f32 %v84, %v210
    %212 = vmatprep.mubr.f32.mxu0 0.0
    %213 = vmatmul.mubr.f32.gmra.mxu0 %v107
    %v214 = vpop.f32.mrf.mxu0
    %v215 = vadd.f32 %v80, %v214
    %v216 = vpop.f32.mrf.mxu0
    %v217 = vadd.f32 %v84, %v216
    %218 = vmatprep.mubr.f32.mxu0 0.0
    %219 = vmatmul.mubr.f32.gmra.mxu0 %v110
    %v220 = vpop.f32.mrf.mxu0
    %v221 = vadd.f32 %v80, %v220
    %v222 = vpop.f32.mrf.mxu0
    %v223 = vadd.f32 %v84, %v222
    %224 = vdwg.mxu0
    %225 = vst [vmem:[#allocation2] sm:$0xff] %v179
    %226 = vst [vmem:[#allocation2 + $0x8] sm:$0xff] %v181
    %227 = vst [vmem:[#allocation2 + $0x10] sm:$0xff] %v185
    %228 = vst [vmem:[#allocation2 + $0x18] sm:$0xff] %v187
    %229 = vst [vmem:[#allocation2 + $0x20] sm:$0xff] %v191
    %230 = vst [vmem:[#allocation2 + $0x28] sm:$0xff] %v193
    %231 = vst [vmem:[#allocation2 + $0x30] sm:$0xff] %v197
    %232 = vst [vmem:[#allocation2 + $0x38] sm:$0xff] %v199
    %233 = vst [vmem:[#allocation2 + $0x40] sm:$0xff] %v203
    %234 = vst [vmem:[#allocation2 + $0x48] sm:$0xff] %v205
    %235 = vst [vmem:[#allocation2 + $0x50] sm:$0xff] %v209
    %236 = vst [vmem:[#allocation2 + $0x58] sm:$0xff] %v211
    %237 = vst [vmem:[#allocation2 + $0x60] sm:$0xff] %v215
    %238 = vst [vmem:[#allocation2 + $0x68] sm:$0xff] %v217
    %239 = vst [vmem:[#allocation2 + $0x70] sm:$0xff] %v221
    %240 = vst [vmem:[#allocation2 + $0x78] sm:$0xff] %v223
    %v241 = vld [vmem:[#allocation8] sm:$0xff]
    %v242 = vld [vmem:[#allocation8 + $0x8] sm:$0xff]
    %v243 = vld [vmem:[#allocation8 + $0x10] sm:$0xff]
    %v244 = vld [vmem:[#allocation8 + $0x18] sm:$0xff]
    %v245 = vld [vmem:[#allocation8 + $0x20] sm:$0xff]
    %v246 = vld [vmem:[#allocation8 + $0x28] sm:$0xff]
    %v247 = vld [vmem:[#allocation8 + $0x30] sm:$0xff]
    %v248 = vld [vmem:[#allocation8 + $0x38] sm:$0xff]
    %v249 = vld [vmem:[#allocation8 + $0x40] sm:$0xff]
    %v250 = vld [vmem:[#allocation8 + $0x48] sm:$0xff]
    %v251 = vld [vmem:[#allocation8 + $0x50] sm:$0xff]
    %v252 = vld [vmem:[#allocation8 + $0x58] sm:$0xff]
    %v253 = vld [vmem:[#allocation8 + $0x60] sm:$0xff]
    %v254 = vld [vmem:[#allocation8 + $0x68] sm:$0xff]
    %v255 = vld [vmem:[#allocation8 + $0x70] sm:$0xff]
    %v256 = vld [vmem:[#allocation8 + $0x78] sm:$0xff]
    %v257 = vld [vmem:[#allocation2] sm:$0xff]
    %s258 = scalar_lea.vmem [#allocation2], 112
    %v259 = vld [vmem:[%s258 + $0x8] sm:$0xff]
    %vm260 = vcmask 523264
    %v262 = vsel %vm260, 0.0, 0
    %264 = vmatprep.subr.mxu0 0.0
    %265 = vmatpush1.msra.mxu0 0.0
    %266 = vmatprep.subr.mxu0 0.0
    %267 = vmatpush1.msra.mxu0 0.0
    %268 = vmatprep.subr.mxu0 0.0
    %269 = vmatpush1.msra.mxu0 0.0
    %270 = vmatprep.subr.mxu0 0.0
    %271 = vmatpush1.msra.mxu0 0.0
    %272 = vmatprep.subr.mxu0 0.0
    %273 = vmatpush1.msra.mxu0 0.0
    %274 = vmatprep.subr.mxu0 0.0
    %275 = vmatpush1.msra.mxu0 0.0
    %276 = vmatprep.subr.mxu0 0.0
    %277 = vmatpush1.msra.mxu0 0.0
    %278 = vmatprep.subr.mxu0 0.0
    %279 = vmatpush1.msra.mxu0 0.0
    %280 = vmatprep.subr.mxu0 %v256
    %281 = vmatpush1.msra.mxu0 %v255
    %282 = vmatprep.subr.mxu0 %v254
    %283 = vmatpush1.msra.mxu0 %v253
    %284 = vmatprep.subr.mxu0 %v252
    %285 = vmatpush1.msra.mxu0 %v251
    %286 = vmatprep.subr.mxu0 %v250
    %287 = vmatpush1.msra.mxu0 %v249
    %288 = vmatprep.subr.mxu0 %v248
    %289 = vmatpush1.msra.mxu0 %v247
    %290 = vmatprep.subr.mxu0 %v246
    %291 = vmatpush1.msra.mxu0 %v245
    %292 = vmatprep.subr.mxu0 %v244
    %293 = vmatpush1.msra.mxu0 %v243
    %294 = vmatprep.subr.mxu0 %v242
    %295 = vmatpush1.msra.mxu0 %v241
    %296 = vmatprep.subr.mxu0 0.0
    %297 = vmatpush2.msra.mxu0 0.0
    %298 = vmatprep.subr.mxu0 0.0
    %299 = vmatpush2.msra.mxu0 0.0
    %300 = vmatprep.subr.mxu0 0.0
    %301 = vmatpush2.msra.mxu0 0.0
    %302 = vmatprep.subr.mxu0 0.0
    %303 = vmatpush2.msra.mxu0 0.0
    %304 = vmatprep.subr.mxu0 0.0
    %305 = vmatpush2.msra.mxu0 0.0
    %306 = vmatprep.subr.mxu0 0.0
    %307 = vmatpush2.msra.mxu0 0.0
    %308 = vmatprep.subr.mxu0 0.0
    %309 = vmatpush2.msra.mxu0 0.0
    %310 = vmatprep.subr.mxu0 0.0
    %311 = vmatpush2.msra.mxu0 0.0
    %312 = vmatprep.subr.mxu0 0.0
    %313 = vmatpush2.msra.mxu0 0.0
    %314 = vmatprep.subr.mxu0 0.0
    %315 = vmatpush2.msra.mxu0 0.0
    %316 = vmatprep.subr.mxu0 0.0
    %317 = vmatpush2.msra.mxu0 0.0
    %318 = vmatprep.subr.mxu0 0.0
    %319 = vmatpush2.msra.mxu0 0.0
    %320 = vmatprep.subr.mxu0 0.0
    %321 = vmatpush2.msra.mxu0 0.0
    %322 = vmatprep.subr.mxu0 0.0
    %323 = vmatpush2.msra.mxu0 0.0
    %324 = vmatprep.subr.mxu0 0.0
    %325 = vmatpush2.msra.mxu0 0.0
    %326 = vmatprep.subr.mxu0 0.0
    %327 = vmatpush2.msra.mxu0 0.0
    %328 = vmatprep.mubr.f32.mxu0 0.0
    %329 = vmatmul.mubr.f32.gmra.mxu0 %v262
    %v330 = vpop.f32.mrf.mxu0
    %v331 = vadd.f32 0.0, %v330
    %v332 = vpop.f32.mrf.mxu0
    %v333 = vadd.f32 0.0, %v332
    %334 = vdwg.mxu0
    %v335 = vadd.f32 %v257, %v331
    %v336 = vadd.f32 %v259, %v333
    %v337 = vxor.u32 %v335, 2147483648
    %v338 = vxor.u32 %v336, 2147483648
    %v339 = vmul.f32 %v337, 1.442695
    %v340 = vpow.pop %v339
    %v341 = vmul.f32 %v338, 1.442695
    %v342 = vpow.pop %v341
    %v343 = vadd.f32 %v340, 1.0
    %v344 = vadd.f32 %v342, 1.0
    %v345 = vrcp.pop %v343
    %v346 = vmul.f32 1.0, %v345
    %v347 = vrcp.pop %v344
    %v348 = vmul.f32 1.0, %v347
    %v349 = vtanh.pop %v335
    %v350 = vtanh.pop %v336
    %352 = vrot.lane.b32.xlu0 %v348, 32
    %v353 = vpop.permute.xlu0 %352
    %v355 = vsel %vm87, %v346, %v353
    %357 = vrot.lane.b32.xlu0 %v346, 96
    %v358 = vpop.permute.xlu0 %357
    %v360 = vsel %vm87, %v358, %v348
    %362 = vrot.lane.b32.xlu0 %v349, 64
    %v363 = vpop.permute.xlu0 %362
    %366 = vrot.lane.b32.xlu0 %v350, 96
    %v367 = vpop.permute.xlu0 %366
    %v369 = vsel %vm87, %v363, %v367
    %370 = vrot.lane.b32.xlu0 %v346, 32
    %v371 = vpop.permute.xlu0 %370
    %373 = vrot.lane.b32.xlu0 %v348, 64
    %v374 = vpop.permute.xlu0 %373
    %v376 = vsel %vm87, %v371, %v374
    %v377 = vmul.f32 %v360, 0.0
    %v378 = vmul.f32 %v355, %v369
    %v379 = vadd.f32 %v377, %v378
    %v380 = vtanh.pop %v379
    %v381 = vmul.f32 %v376, %v380
    %382 = vst.msk [vmem:[#allocation9] sm:$0xff] %vm87, %v381
    %384 = vrot.lane.b32.xlu0 %v381, 96
    %v385 = vpop.permute.xlu0 %384
    %s387 = scalar_lea.vmem [#allocation9], 120
    %388 = vst.msk [vmem:[%s387] sm:$0xff] %vm87, %v385
    %s389 = scalar_lea.vmem [#allocation2], 16
    %v390 = vld [vmem:[%s389] sm:$0xff]
    %s391 = scalar_lea.vmem [#allocation2], 96
    %v392 = vld [vmem:[%s391 + $0x8] sm:$0xff]
    %v393 = vsel %vm260, %v381, 0
    %395 = vmatprep.subr.mxu0 0.0
    %396 = vmatpush1.msra.mxu0 0.0
    %397 = vmatprep.subr.mxu0 0.0
    %398 = vmatpush1.msra.mxu0 0.0
    %399 = vmatprep.subr.mxu0 0.0
    %400 = vmatpush1.msra.mxu0 0.0
    %401 = vmatprep.subr.mxu0 0.0
    %402 = vmatpush1.msra.mxu0 0.0
    %403 = vmatprep.subr.mxu0 0.0
    %404 = vmatpush1.msra.mxu0 0.0
    %405 = vmatprep.subr.mxu0 0.0
    %406 = vmatpush1.msra.mxu0 0.0
    %407 = vmatprep.subr.mxu0 0.0
    %408 = vmatpush1.msra.mxu0 0.0
    %409 = vmatprep.subr.mxu0 0.0
    %410 = vmatpush1.msra.mxu0 0.0
    %411 = vmatprep.subr.mxu0 %v256
    %412 = vmatpush1.msra.mxu0 %v255
    %413 = vmatprep.subr.mxu0 %v254
    %414 = vmatpush1.msra.mxu0 %v253
    %415 = vmatprep.subr.mxu0 %v252
    %416 = vmatpush1.msra.mxu0 %v251
    %417 = vmatprep.subr.mxu0 %v250
    %418 = vmatpush1.msra.mxu0 %v249
    %419 = vmatprep.subr.mxu0 %v248
    %420 = vmatpush1.msra.mxu0 %v247
    %421 = vmatprep.subr.mxu0 %v246
    %422 = vmatpush1.msra.mxu0 %v245
    %423 = vmatprep.subr.mxu0 %v244
    %424 = vmatpush1.msra.mxu0 %v243
    %425 = vmatprep.subr.mxu0 %v242
    %426 = vmatpush1.msra.mxu0 %v241
    %427 = vmatprep.subr.mxu0 0.0
    %428 = vmatpush2.msra.mxu0 0.0
    %429 = vmatprep.subr.mxu0 0.0
    %430 = vmatpush2.msra.mxu0 0.0
    %431 = vmatprep.subr.mxu0 0.0
    %432 = vmatpush2.msra.mxu0 0.0
    %433 = vmatprep.subr.mxu0 0.0
    %434 = vmatpush2.msra.mxu0 0.0
    %435 = vmatprep.subr.mxu0 0.0
    %436 = vmatpush2.msra.mxu0 0.0
    %437 = vmatprep.subr.mxu0 0.0
    %438 = vmatpush2.msra.mxu0 0.0
    %439 = vmatprep.subr.mxu0 0.0
    %440 = vmatpush2.msra.mxu0 0.0
    %441 = vmatprep.subr.mxu0 0.0
    %442 = vmatpush2.msra.mxu0 0.0
    %443 = vmatprep.subr.mxu0 0.0
    %444 = vmatpush2.msra.mxu0 0.0
    %445 = vmatprep.subr.mxu0 0.0
    %446 = vmatpush2.msra.mxu0 0.0
    %447 = vmatprep.subr.mxu0 0.0
    %448 = vmatpush2.msra.mxu0 0.0
    %449 = vmatprep.subr.mxu0 0.0
    %450 = vmatpush2.msra.mxu0 0.0
    %451 = vmatprep.subr.mxu0 0.0
    %452 = vmatpush2.msra.mxu0 0.0
    %453 = vmatprep.subr.mxu0 0.0
    %454 = vmatpush2.msra.mxu0 0.0
    %455 = vmatprep.subr.mxu0 0.0
    %456 = vmatpush2.msra.mxu0 0.0
    %457 = vmatprep.subr.mxu0 0.0
    %458 = vmatpush2.msra.mxu0 0.0
    %459 = vmatprep.mubr.f32.mxu0 0.0
    %460 = vmatmul.mubr.f32.gmra.mxu0 %v393
    %v461 = vpop.f32.mrf.mxu0
    %v462 = vadd.f32 0.0, %v461
    %v463 = vpop.f32.mrf.mxu0
    %v464 = vadd.f32 0.0, %v463
    %465 = vdwg.mxu0
    %v466 = vadd.f32 %v390, %v462
    %v467 = vadd.f32 %v392, %v464
    %v468 = vxor.u32 %v466, 2147483648
    %v469 = vxor.u32 %v467, 2147483648
    %v470 = vmul.f32 %v468, 1.442695
    %v471 = vpow.pop %v470
    %v472 = vmul.f32 %v469, 1.442695
    %v473 = vpow.pop %v472
    %v474 = vadd.f32 %v471, 1.0
    %v475 = vadd.f32 %v473, 1.0
    %v476 = vrcp.pop %v474
    %v477 = vmul.f32 1.0, %v476
    %v478 = vrcp.pop %v475
    %v479 = vmul.f32 1.0, %v478
    %v480 = vtanh.pop %v466
    %v481 = vtanh.pop %v467
    %483 = vrot.lane.b32.xlu0 %v479, 32
    %v484 = vpop.permute.xlu0 %483
    %v486 = vsel %vm87, %v477, %v484
    %488 = vrot.lane.b32.xlu0 %v477, 96
    %v489 = vpop.permute.xlu0 %488
    %v491 = vsel %vm87, %v489, %v479
    %493 = vrot.lane.b32.xlu0 %v480, 64
    %v494 = vpop.permute.xlu0 %493
    %497 = vrot.lane.b32.xlu0 %v481, 96
    %v498 = vpop.permute.xlu0 %497
    %v500 = vsel %vm87, %v494, %v498
    %501 = vrot.lane.b32.xlu0 %v477, 32
    %v502 = vpop.permute.xlu0 %501
    %504 = vrot.lane.b32.xlu0 %v479, 64
    %v505 = vpop.permute.xlu0 %504
    %v507 = vsel %vm87, %v502, %v505
    %v508 = vmul.f32 %v491, %v379
    %v509 = vmul.f32 %v486, %v500
    %v510 = vadd.f32 %v508, %v509
    %v511 = vtanh.pop %v510
    %v512 = vmul.f32 %v507, %v511
    %s513 = scalar_lea.vmem [#allocation9], 16
    %514 = vst.msk [vmem:[%s513] sm:$0xff] %vm87, %v512
    %516 = vrot.lane.b32.xlu0 %v512, 96
    %v517 = vpop.permute.xlu0 %516
    %s519 = scalar_lea.vmem [#allocation9], 104
    %520 = vst.msk [vmem:[%s519] sm:$0xff] %vm87, %v517
    %s521 = scalar_lea.vmem [#allocation2], 32
    %v522 = vld [vmem:[%s521] sm:$0xff]
    %s523 = scalar_lea.vmem [#allocation2], 80
    %v524 = vld [vmem:[%s523 + $0x8] sm:$0xff]
    %v525 = vsel %vm260, %v512, 0
    %527 = vmatprep.subr.mxu0 0.0
    %528 = vmatpush1.msra.mxu0 0.0
    %529 = vmatprep.subr.mxu0 0.0
    %530 = vmatpush1.msra.mxu0 0.0
    %531 = vmatprep.subr.mxu0 0.0
    %532 = vmatpush1.msra.mxu0 0.0
    %533 = vmatprep.subr.mxu0 0.0
    %534 = vmatpush1.msra.mxu0 0.0
    %535 = vmatprep.subr.mxu0 0.0
    %536 = vmatpush1.msra.mxu0 0.0
    %537 = vmatprep.subr.mxu0 0.0
    %538 = vmatpush1.msra.mxu0 0.0
    %539 = vmatprep.subr.mxu0 0.0
    %540 = vmatpush1.msra.mxu0 0.0
    %541 = vmatprep.subr.mxu0 0.0
    %542 = vmatpush1.msra.mxu0 0.0
    %543 = vmatprep.subr.mxu0 %v256
    %544 = vmatpush1.msra.mxu0 %v255
    %545 = vmatprep.subr.mxu0 %v254
    %546 = vmatpush1.msra.mxu0 %v253
    %547 = vmatprep.subr.mxu0 %v252
    %548 = vmatpush1.msra.mxu0 %v251
    %549 = vmatprep.subr.mxu0 %v250
    %550 = vmatpush1.msra.mxu0 %v249
    %551 = vmatprep.subr.mxu0 %v248
    %552 = vmatpush1.msra.mxu0 %v247
    %553 = vmatprep.subr.mxu0 %v246
    %554 = vmatpush1.msra.mxu0 %v245
    %555 = vmatprep.subr.mxu0 %v244
    %556 = vmatpush1.msra.mxu0 %v243
    %557 = vmatprep.subr.mxu0 %v242
    %558 = vmatpush1.msra.mxu0 %v241
    %559 = vmatprep.subr.mxu0 0.0
    %560 = vmatpush2.msra.mxu0 0.0
    %561 = vmatprep.subr.mxu0 0.0
    %562 = vmatpush2.msra.mxu0 0.0
    %563 = vmatprep.subr.mxu0 0.0
    %564 = vmatpush2.msra.mxu0 0.0
    %565 = vmatprep.subr.mxu0 0.0
    %566 = vmatpush2.msra.mxu0 0.0
    %567 = vmatprep.subr.mxu0 0.0
    %568 = vmatpush2.msra.mxu0 0.0
    %569 = vmatprep.subr.mxu0 0.0
    %570 = vmatpush2.msra.mxu0 0.0
    %571 = vmatprep.subr.mxu0 0.0
    %572 = vmatpush2.msra.mxu0 0.0
    %573 = vmatprep.subr.mxu0 0.0
    %574 = vmatpush2.msra.mxu0 0.0
    %575 = vmatprep.subr.mxu0 0.0
    %576 = vmatpush2.msra.mxu0 0.0
    %577 = vmatprep.subr.mxu0 0.0
    %578 = vmatpush2.msra.mxu0 0.0
    %579 = vmatprep.subr.mxu0 0.0
    %580 = vmatpush2.msra.mxu0 0.0
    %581 = vmatprep.subr.mxu0 0.0
    %582 = vmatpush2.msra.mxu0 0.0
    %583 = vmatprep.subr.mxu0 0.0
    %584 = vmatpush2.msra.mxu0 0.0
    %585 = vmatprep.subr.mxu0 0.0
    %586 = vmatpush2.msra.mxu0 0.0
    %587 = vmatprep.subr.mxu0 0.0
    %588 = vmatpush2.msra.mxu0 0.0
    %589 = vmatprep.subr.mxu0 0.0
    %590 = vmatpush2.msra.mxu0 0.0
    %591 = vmatprep.mubr.f32.mxu0 0.0
    %592 = vmatmul.mubr.f32.gmra.mxu0 %v525
    %v593 = vpop.f32.mrf.mxu0
    %v594 = vadd.f32 0.0, %v593
    %v595 = vpop.f32.mrf.mxu0
    %v596 = vadd.f32 0.0, %v595
    %597 = vdwg.mxu0
    %v598 = vadd.f32 %v522, %v594
    %v599 = vadd.f32 %v524, %v596
    %v600 = vxor.u32 %v598, 2147483648
    %v601 = vxor.u32 %v599, 2147483648
    %v602 = vmul.f32 %v600, 1.442695
    %v603 = vpow.pop %v602
    %v604 = vmul.f32 %v601, 1.442695
    %v605 = vpow.pop %v604
    %v606 = vadd.f32 %v603, 1.0
    %v607 = vadd.f32 %v605, 1.0
    %v608 = vrcp.pop %v606
    %v609 = vmul.f32 1.0, %v608
    %v610 = vrcp.pop %v607
    %v611 = vmul.f32 1.0, %v610
    %v612 = vtanh.pop %v598
    %v613 = vtanh.pop %v599
    %615 = vrot.lane.b32.xlu0 %v611, 32
    %v616 = vpop.permute.xlu0 %615
    %v618 = vsel %vm87, %v609, %v616
    %620 = vrot.lane.b32.xlu0 %v609, 96
    %v621 = vpop.permute.xlu0 %620
    %v623 = vsel %vm87, %v621, %v611
    %625 = vrot.lane.b32.xlu0 %v612, 64
    %v626 = vpop.permute.xlu0 %625
    %629 = vrot.lane.b32.xlu0 %v613, 96
    %v630 = vpop.permute.xlu0 %629
    %v632 = vsel %vm87, %v626, %v630
    %633 = vrot.lane.b32.xlu0 %v609, 32
    %v634 = vpop.permute.xlu0 %633
    %636 = vrot.lane.b32.xlu0 %v611, 64
    %v637 = vpop.permute.xlu0 %636
    %v639 = vsel %vm87, %v634, %v637
    %v640 = vmul.f32 %v623, %v510
    %v641 = vmul.f32 %v618, %v632
    %v642 = vadd.f32 %v640, %v641
    %v643 = vtanh.pop %v642
    %v644 = vmul.f32 %v639, %v643
    %s645 = scalar_lea.vmem [#allocation9], 32
    %646 = vst.msk [vmem:[%s645] sm:$0xff] %vm87, %v644
    %648 = vrot.lane.b32.xlu0 %v644, 96
    %v649 = vpop.permute.xlu0 %648
    %s651 = scalar_lea.vmem [#allocation9], 88
    %652 = vst.msk [vmem:[%s651] sm:$0xff] %vm87, %v649
    %s653 = scalar_lea.vmem [#allocation2], 48
    %v654 = vld [vmem:[%s653] sm:$0xff]
    %s655 = scalar_lea.vmem [#allocation2], 64
    %v656 = vld [vmem:[%s655 + $0x8] sm:$0xff]
    %v657 = vsel %vm260, %v644, 0
    %659 = vmatprep.subr.mxu0 0.0
    %660 = vmatpush1.msra.mxu0 0.0
    %661 = vmatprep.subr.mxu0 0.0
    %662 = vmatpush1.msra.mxu0 0.0
    %663 = vmatprep.subr.mxu0 0.0
    %664 = vmatpush1.msra.mxu0 0.0
    %665 = vmatprep.subr.mxu0 0.0
    %666 = vmatpush1.msra.mxu0 0.0
    %667 = vmatprep.subr.mxu0 0.0
    %668 = vmatpush1.msra.mxu0 0.0
    %669 = vmatprep.subr.mxu0 0.0
    %670 = vmatpush1.msra.mxu0 0.0
    %671 = vmatprep.subr.mxu0 0.0
    %672 = vmatpush1.msra.mxu0 0.0
    %673 = vmatprep.subr.mxu0 0.0
    %674 = vmatpush1.msra.mxu0 0.0
    %675 = vmatprep.subr.mxu0 %v256
    %676 = vmatpush1.msra.mxu0 %v255
    %677 = vmatprep.subr.mxu0 %v254
    %678 = vmatpush1.msra.mxu0 %v253
    %679 = vmatprep.subr.mxu0 %v252
    %680 = vmatpush1.msra.mxu0 %v251
    %681 = vmatprep.subr.mxu0 %v250
    %682 = vmatpush1.msra.mxu0 %v249
    %683 = vmatprep.subr.mxu0 %v248
    %684 = vmatpush1.msra.mxu0 %v247
    %685 = vmatprep.subr.mxu0 %v246
    %686 = vmatpush1.msra.mxu0 %v245
    %687 = vmatprep.subr.mxu0 %v244
    %688 = vmatpush1.msra.mxu0 %v243
    %689 = vmatprep.subr.mxu0 %v242
    %690 = vmatpush1.msra.mxu0 %v241
    %691 = vmatprep.subr.mxu0 0.0
    %692 = vmatpush2.msra.mxu0 0.0
    %693 = vmatprep.subr.mxu0 0.0
    %694 = vmatpush2.msra.mxu0 0.0
    %695 = vmatprep.subr.mxu0 0.0
    %696 = vmatpush2.msra.mxu0 0.0
    %697 = vmatprep.subr.mxu0 0.0
    %698 = vmatpush2.msra.mxu0 0.0
    %699 = vmatprep.subr.mxu0 0.0
    %700 = vmatpush2.msra.mxu0 0.0
    %701 = vmatprep.subr.mxu0 0.0
    %702 = vmatpush2.msra.mxu0 0.0
    %703 = vmatprep.subr.mxu0 0.0
    %704 = vmatpush2.msra.mxu0 0.0
    %705 = vmatprep.subr.mxu0 0.0
    %706 = vmatpush2.msra.mxu0 0.0
    %707 = vmatprep.subr.mxu0 0.0
    %708 = vmatpush2.msra.mxu0 0.0
    %709 = vmatprep.subr.mxu0 0.0
    %710 = vmatpush2.msra.mxu0 0.0
    %711 = vmatprep.subr.mxu0 0.0
    %712 = vmatpush2.msra.mxu0 0.0
    %713 = vmatprep.subr.mxu0 0.0
    %714 = vmatpush2.msra.mxu0 0.0
    %715 = vmatprep.subr.mxu0 0.0
    %716 = vmatpush2.msra.mxu0 0.0
    %717 = vmatprep.subr.mxu0 0.0
    %718 = vmatpush2.msra.mxu0 0.0
    %719 = vmatprep.subr.mxu0 0.0
    %720 = vmatpush2.msra.mxu0 0.0
    %721 = vmatprep.subr.mxu0 0.0
    %722 = vmatpush2.msra.mxu0 0.0
    %723 = vmatprep.mubr.f32.mxu0 0.0
    %724 = vmatmul.mubr.f32.gmra.mxu0 %v657
    %v725 = vpop.f32.mrf.mxu0
    %v726 = vadd.f32 0.0, %v725
    %v727 = vpop.f32.mrf.mxu0
    %v728 = vadd.f32 0.0, %v727
    %729 = vdwg.mxu0
    %v730 = vadd.f32 %v654, %v726
    %v731 = vadd.f32 %v656, %v728
    %v732 = vxor.u32 %v730, 2147483648
    %v733 = vxor.u32 %v731, 2147483648
    %v734 = vmul.f32 %v732, 1.442695
    %v735 = vpow.pop %v734
    %v736 = vmul.f32 %v733, 1.442695
    %v737 = vpow.pop %v736
    %v738 = vadd.f32 %v735, 1.0
    %v739 = vadd.f32 %v737, 1.0
    %v740 = vrcp.pop %v738
    %v741 = vmul.f32 1.0, %v740
    %v742 = vrcp.pop %v739
    %v743 = vmul.f32 1.0, %v742
    %v744 = vtanh.pop %v730
    %v745 = vtanh.pop %v731
    %747 = vrot.lane.b32.xlu0 %v743, 32
    %v748 = vpop.permute.xlu0 %747
    %v750 = vsel %vm87, %v741, %v748
    %752 = vrot.lane.b32.xlu0 %v741, 96
    %v753 = vpop.permute.xlu0 %752
    %v755 = vsel %vm87, %v753, %v743
    %757 = vrot.lane.b32.xlu0 %v744, 64
    %v758 = vpop.permute.xlu0 %757
    %761 = vrot.lane.b32.xlu0 %v745, 96
    %v762 = vpop.permute.xlu0 %761
    %v764 = vsel %vm87, %v758, %v762
    %765 = vrot.lane.b32.xlu0 %v741, 32
    %v766 = vpop.permute.xlu0 %765
    %768 = vrot.lane.b32.xlu0 %v743, 64
    %v769 = vpop.permute.xlu0 %768
    %v771 = vsel %vm87, %v766, %v769
    %v772 = vmul.f32 %v755, %v642
    %v773 = vmul.f32 %v750, %v764
    %v774 = vadd.f32 %v772, %v773
    %v775 = vtanh.pop %v774
    %v776 = vmul.f32 %v771, %v775
    %s777 = scalar_lea.vmem [#allocation9], 48
    %778 = vst.msk [vmem:[%s777] sm:$0xff] %vm87, %v776
    %780 = vrot.lane.b32.xlu0 %v776, 96
    %v781 = vpop.permute.xlu0 %780
    %s783 = scalar_lea.vmem [#allocation9], 72
    %784 = vst.msk [vmem:[%s783] sm:$0xff] %vm87, %v781
    %v785 = vld [vmem:[%s655] sm:$0xff]
    %v786 = vld [vmem:[%s653 + $0x8] sm:$0xff]
    %v787 = vsel %vm260, %v776, 0
    %789 = vmatprep.subr.mxu0 0.0
    %790 = vmatpush1.msra.mxu0 0.0
    %791 = vmatprep.subr.mxu0 0.0
    %792 = vmatpush1.msra.mxu0 0.0
    %793 = vmatprep.subr.mxu0 0.0
    %794 = vmatpush1.msra.mxu0 0.0
    %795 = vmatprep.subr.mxu0 0.0
    %796 = vmatpush1.msra.mxu0 0.0
    %797 = vmatprep.subr.mxu0 0.0
    %798 = vmatpush1.msra.mxu0 0.0
    %799 = vmatprep.subr.mxu0 0.0
    %800 = vmatpush1.msra.mxu0 0.0
    %801 = vmatprep.subr.mxu0 0.0
    %802 = vmatpush1.msra.mxu0 0.0
    %803 = vmatprep.subr.mxu0 0.0
    %804 = vmatpush1.msra.mxu0 0.0
    %805 = vmatprep.subr.mxu0 %v256
    %806 = vmatpush1.msra.mxu0 %v255
    %807 = vmatprep.subr.mxu0 %v254
    %808 = vmatpush1.msra.mxu0 %v253
    %809 = vmatprep.subr.mxu0 %v252
    %810 = vmatpush1.msra.mxu0 %v251
    %811 = vmatprep.subr.mxu0 %v250
    %812 = vmatpush1.msra.mxu0 %v249
    %813 = vmatprep.subr.mxu0 %v248
    %814 = vmatpush1.msra.mxu0 %v247
    %815 = vmatprep.subr.mxu0 %v246
    %816 = vmatpush1.msra.mxu0 %v245
    %817 = vmatprep.subr.mxu0 %v244
    %818 = vmatpush1.msra.mxu0 %v243
    %819 = vmatprep.subr.mxu0 %v242
    %820 = vmatpush1.msra.mxu0 %v241
    %821 = vmatprep.subr.mxu0 0.0
    %822 = vmatpush2.msra.mxu0 0.0
    %823 = vmatprep.subr.mxu0 0.0
    %824 = vmatpush2.msra.mxu0 0.0
    %825 = vmatprep.subr.mxu0 0.0
    %826 = vmatpush2.msra.mxu0 0.0
    %827 = vmatprep.subr.mxu0 0.0
    %828 = vmatpush2.msra.mxu0 0.0
    %829 = vmatprep.subr.mxu0 0.0
    %830 = vmatpush2.msra.mxu0 0.0
    %831 = vmatprep.subr.mxu0 0.0
    %832 = vmatpush2.msra.mxu0 0.0
    %833 = vmatprep.subr.mxu0 0.0
    %834 = vmatpush2.msra.mxu0 0.0
    %835 = vmatprep.subr.mxu0 0.0
    %836 = vmatpush2.msra.mxu0 0.0
    %837 = vmatprep.subr.mxu0 0.0
    %838 = vmatpush2.msra.mxu0 0.0
    %839 = vmatprep.subr.mxu0 0.0
    %840 = vmatpush2.msra.mxu0 0.0
    %841 = vmatprep.subr.mxu0 0.0
    %842 = vmatpush2.msra.mxu0 0.0
    %843 = vmatprep.subr.mxu0 0.0
    %844 = vmatpush2.msra.mxu0 0.0
    %845 = vmatprep.subr.mxu0 0.0
    %846 = vmatpush2.msra.mxu0 0.0
    %847 = vmatprep.subr.mxu0 0.0
    %848 = vmatpush2.msra.mxu0 0.0
    %849 = vmatprep.subr.mxu0 0.0
    %850 = vmatpush2.msra.mxu0 0.0
    %851 = vmatprep.subr.mxu0 0.0
    %852 = vmatpush2.msra.mxu0 0.0
    %853 = vmatprep.mubr.f32.mxu0 0.0
    %854 = vmatmul.mubr.f32.gmra.mxu0 %v787
    %v855 = vpop.f32.mrf.mxu0
    %v856 = vadd.f32 0.0, %v855
    %v857 = vpop.f32.mrf.mxu0
    %v858 = vadd.f32 0.0, %v857
    %859 = vdwg.mxu0
    %v860 = vadd.f32 %v785, %v856
    %v861 = vadd.f32 %v786, %v858
    %v862 = vxor.u32 %v860, 2147483648
    %v863 = vxor.u32 %v861, 2147483648
    %v864 = vmul.f32 %v862, 1.442695
    %v865 = vpow.pop %v864
    %v866 = vmul.f32 %v863, 1.442695
    %v867 = vpow.pop %v866
    %v868 = vadd.f32 %v865, 1.0
    %v869 = vadd.f32 %v867, 1.0
    %v870 = vrcp.pop %v868
    %v871 = vmul.f32 1.0, %v870
    %v872 = vrcp.pop %v869
    %v873 = vmul.f32 1.0, %v872
    %v874 = vtanh.pop %v860
    %v875 = vtanh.pop %v861
    %877 = vrot.lane.b32.xlu0 %v873, 32
    %v878 = vpop.permute.xlu0 %877
    %v880 = vsel %vm87, %v871, %v878
    %882 = vrot.lane.b32.xlu0 %v871, 96
    %v883 = vpop.permute.xlu0 %882
    %v885 = vsel %vm87, %v883, %v873
    %887 = vrot.lane.b32.xlu0 %v874, 64
    %v888 = vpop.permute.xlu0 %887
    %891 = vrot.lane.b32.xlu0 %v875, 96
    %v892 = vpop.permute.xlu0 %891
    %v894 = vsel %vm87, %v888, %v892
    %895 = vrot.lane.b32.xlu0 %v871, 32
    %v896 = vpop.permute.xlu0 %895
    %898 = vrot.lane.b32.xlu0 %v873, 64
    %v899 = vpop.permute.xlu0 %898
    %v901 = vsel %vm87, %v896, %v899
    %v902 = vmul.f32 %v885, %v774
    %v903 = vmul.f32 %v880, %v894
    %v904 = vadd.f32 %v902, %v903
    %v905 = vtanh.pop %v904
    %v906 = vmul.f32 %v901, %v905
    %s907 = scalar_lea.vmem [#allocation9], 64
    %908 = vst.msk [vmem:[%s907] sm:$0xff] %vm87, %v906
    %910 = vrot.lane.b32.xlu0 %v906, 96
    %v911 = vpop.permute.xlu0 %910
    %s913 = scalar_lea.vmem [#allocation9], 56
    %914 = vst.msk [vmem:[%s913] sm:$0xff] %vm87, %v911
    %v915 = vld [vmem:[%s523] sm:$0xff]
    %v916 = vld [vmem:[%s521 + $0x8] sm:$0xff]
    %v917 = vsel %vm260, %v906, 0
    %919 = vmatprep.subr.mxu0 0.0
    %920 = vmatpush1.msra.mxu0 0.0
    %921 = vmatprep.subr.mxu0 0.0
    %922 = vmatpush1.msra.mxu0 0.0
    %923 = vmatprep.subr.mxu0 0.0
    %924 = vmatpush1.msra.mxu0 0.0
    %925 = vmatprep.subr.mxu0 0.0
    %926 = vmatpush1.msra.mxu0 0.0
    %927 = vmatprep.subr.mxu0 0.0
    %928 = vmatpush1.msra.mxu0 0.0
    %929 = vmatprep.subr.mxu0 0.0
    %930 = vmatpush1.msra.mxu0 0.0
    %931 = vmatprep.subr.mxu0 0.0
    %932 = vmatpush1.msra.mxu0 0.0
    %933 = vmatprep.subr.mxu0 0.0
    %934 = vmatpush1.msra.mxu0 0.0
    %935 = vmatprep.subr.mxu0 %v256
    %936 = vmatpush1.msra.mxu0 %v255
    %937 = vmatprep.subr.mxu0 %v254
    %938 = vmatpush1.msra.mxu0 %v253
    %939 = vmatprep.subr.mxu0 %v252
    %940 = vmatpush1.msra.mxu0 %v251
    %941 = vmatprep.subr.mxu0 %v250
    %942 = vmatpush1.msra.mxu0 %v249
    %943 = vmatprep.subr.mxu0 %v248
    %944 = vmatpush1.msra.mxu0 %v247
    %945 = vmatprep.subr.mxu0 %v246
    %946 = vmatpush1.msra.mxu0 %v245
    %947 = vmatprep.subr.mxu0 %v244
    %948 = vmatpush1.msra.mxu0 %v243
    %949 = vmatprep.subr.mxu0 %v242
    %950 = vmatpush1.msra.mxu0 %v241
    %951 = vmatprep.subr.mxu0 0.0
    %952 = vmatpush2.msra.mxu0 0.0
    %953 = vmatprep.subr.mxu0 0.0
    %954 = vmatpush2.msra.mxu0 0.0
    %955 = vmatprep.subr.mxu0 0.0
    %956 = vmatpush2.msra.mxu0 0.0
    %957 = vmatprep.subr.mxu0 0.0
    %958 = vmatpush2.msra.mxu0 0.0
    %959 = vmatprep.subr.mxu0 0.0
    %960 = vmatpush2.msra.mxu0 0.0
    %961 = vmatprep.subr.mxu0 0.0
    %962 = vmatpush2.msra.mxu0 0.0
    %963 = vmatprep.subr.mxu0 0.0
    %964 = vmatpush2.msra.mxu0 0.0
    %965 = vmatprep.subr.mxu0 0.0
    %966 = vmatpush2.msra.mxu0 0.0
    %967 = vmatprep.subr.mxu0 0.0
    %968 = vmatpush2.msra.mxu0 0.0
    %969 = vmatprep.subr.mxu0 0.0
    %970 = vmatpush2.msra.mxu0 0.0
    %971 = vmatprep.subr.mxu0 0.0
    %972 = vmatpush2.msra.mxu0 0.0
    %973 = vmatprep.subr.mxu0 0.0
    %974 = vmatpush2.msra.mxu0 0.0
    %975 = vmatprep.subr.mxu0 0.0
    %976 = vmatpush2.msra.mxu0 0.0
    %977 = vmatprep.subr.mxu0 0.0
    %978 = vmatpush2.msra.mxu0 0.0
    %979 = vmatprep.subr.mxu0 0.0
    %980 = vmatpush2.msra.mxu0 0.0
    %981 = vmatprep.subr.mxu0 0.0
    %982 = vmatpush2.msra.mxu0 0.0
    %983 = vmatprep.mubr.f32.mxu0 0.0
    %984 = vmatmul.mubr.f32.gmra.mxu0 %v917
    %v985 = vpop.f32.mrf.mxu0
    %v986 = vadd.f32 0.0, %v985
    %v987 = vpop.f32.mrf.mxu0
    %v988 = vadd.f32 0.0, %v987
    %989 = vdwg.mxu0
    %v990 = vadd.f32 %v915, %v986
    %v991 = vadd.f32 %v916, %v988
    %v992 = vxor.u32 %v990, 2147483648
    %v993 = vxor.u32 %v991, 2147483648
    %v994 = vmul.f32 %v992, 1.442695
    %v995 = vpow.pop %v994
    %v996 = vmul.f32 %v993, 1.442695
    %v997 = vpow.pop %v996
    %v998 = vadd.f32 %v995, 1.0
    %v999 = vadd.f32 %v997, 1.0
    %v1000 = vrcp.pop %v998
    %v1001 = vmul.f32 1.0, %v1000
    %v1002 = vrcp.pop %v999
    %v1003 = vmul.f32 1.0, %v1002
    %v1004 = vtanh.pop %v990
    %v1005 = vtanh.pop %v991
    %1007 = vrot.lane.b32.xlu0 %v1003, 32
    %v1008 = vpop.permute.xlu0 %1007
    %v1010 = vsel %vm87, %v1001, %v1008
    %1012 = vrot.lane.b32.xlu0 %v1001, 96
    %v1013 = vpop.permute.xlu0 %1012
    %v1015 = vsel %vm87, %v1013, %v1003
    %1017 = vrot.lane.b32.xlu0 %v1004, 64
    %v1018 = vpop.permute.xlu0 %1017
    %1021 = vrot.lane.b32.xlu0 %v1005, 96
    %v1022 = vpop.permute.xlu0 %1021
    %v1024 = vsel %vm87, %v1018, %v1022
    %1025 = vrot.lane.b32.xlu0 %v1001, 32
    %v1026 = vpop.permute.xlu0 %1025
    %1028 = vrot.lane.b32.xlu0 %v1003, 64
    %v1029 = vpop.permute.xlu0 %1028
    %v1031 = vsel %vm87, %v1026, %v1029
    %v1032 = vmul.f32 %v1015, %v904
    %v1033 = vmul.f32 %v1010, %v1024
    %v1034 = vadd.f32 %v1032, %v1033
    %v1035 = vtanh.pop %v1034
    %v1036 = vmul.f32 %v1031, %v1035
    %s1037 = scalar_lea.vmem [#allocation9], 80
    %1038 = vst.msk [vmem:[%s1037] sm:$0xff] %vm87, %v1036
    %1040 = vrot.lane.b32.xlu0 %v1036, 96
    %v1041 = vpop.permute.xlu0 %1040
    %s1043 = scalar_lea.vmem [#allocation9], 40
    %1044 = vst.msk [vmem:[%s1043] sm:$0xff] %vm87, %v1041
    %v1045 = vld [vmem:[%s391] sm:$0xff]
    %v1046 = vld [vmem:[%s389 + $0x8] sm:$0xff]
    %v1047 = vsel %vm260, %v1036, 0
    %1049 = vmatprep.subr.mxu0 0.0
    %1050 = vmatpush1.msra.mxu0 0.0
    %1051 = vmatprep.subr.mxu0 0.0
    %1052 = vmatpush1.msra.mxu0 0.0
    %1053 = vmatprep.subr.mxu0 0.0
    %1054 = vmatpush1.msra.mxu0 0.0
    %1055 = vmatprep.subr.mxu0 0.0
    %1056 = vmatpush1.msra.mxu0 0.0
    %1057 = vmatprep.subr.mxu0 0.0
    %1058 = vmatpush1.msra.mxu0 0.0
    %1059 = vmatprep.subr.mxu0 0.0
    %1060 = vmatpush1.msra.mxu0 0.0
    %1061 = vmatprep.subr.mxu0 0.0
    %1062 = vmatpush1.msra.mxu0 0.0
    %1063 = vmatprep.subr.mxu0 0.0
    %1064 = vmatpush1.msra.mxu0 0.0
    %1065 = vmatprep.subr.mxu0 %v256
    %1066 = vmatpush1.msra.mxu0 %v255
    %1067 = vmatprep.subr.mxu0 %v254
    %1068 = vmatpush1.msra.mxu0 %v253
    %1069 = vmatprep.subr.mxu0 %v252
    %1070 = vmatpush1.msra.mxu0 %v251
    %1071 = vmatprep.subr.mxu0 %v250
    %1072 = vmatpush1.msra.mxu0 %v249
    %1073 = vmatprep.subr.mxu0 %v248
    %1074 = vmatpush1.msra.mxu0 %v247
    %1075 = vmatprep.subr.mxu0 %v246
    %1076 = vmatpush1.msra.mxu0 %v245
    %1077 = vmatprep.subr.mxu0 %v244
    %1078 = vmatpush1.msra.mxu0 %v243
    %1079 = vmatprep.subr.mxu0 %v242
    %1080 = vmatpush1.msra.mxu0 %v241
    %1081 = vmatprep.subr.mxu0 0.0
    %1082 = vmatpush2.msra.mxu0 0.0
    %1083 = vmatprep.subr.mxu0 0.0
    %1084 = vmatpush2.msra.mxu0 0.0
    %1085 = vmatprep.subr.mxu0 0.0
    %1086 = vmatpush2.msra.mxu0 0.0
    %1087 = vmatprep.subr.mxu0 0.0
    %1088 = vmatpush2.msra.mxu0 0.0
    %1089 = vmatprep.subr.mxu0 0.0
    %1090 = vmatpush2.msra.mxu0 0.0
    %1091 = vmatprep.subr.mxu0 0.0
    %1092 = vmatpush2.msra.mxu0 0.0
    %1093 = vmatprep.subr.mxu0 0.0
    %1094 = vmatpush2.msra.mxu0 0.0
    %1095 = vmatprep.subr.mxu0 0.0
    %1096 = vmatpush2.msra.mxu0 0.0
    %1097 = vmatprep.subr.mxu0 0.0
    %1098 = vmatpush2.msra.mxu0 0.0
    %1099 = vmatprep.subr.mxu0 0.0
    %1100 = vmatpush2.msra.mxu0 0.0
    %1101 = vmatprep.subr.mxu0 0.0
    %1102 = vmatpush2.msra.mxu0 0.0
    %1103 = vmatprep.subr.mxu0 0.0
    %1104 = vmatpush2.msra.mxu0 0.0
    %1105 = vmatprep.subr.mxu0 0.0
    %1106 = vmatpush2.msra.mxu0 0.0
    %1107 = vmatprep.subr.mxu0 0.0
    %1108 = vmatpush2.msra.mxu0 0.0
    %1109 = vmatprep.subr.mxu0 0.0
    %1110 = vmatpush2.msra.mxu0 0.0
    %1111 = vmatprep.subr.mxu0 0.0
    %1112 = vmatpush2.msra.mxu0 0.0
    %1113 = vmatprep.mubr.f32.mxu0 0.0
    %1114 = vmatmul.mubr.f32.gmra.mxu0 %v1047
    %v1115 = vpop.f32.mrf.mxu0
    %v1116 = vadd.f32 0.0, %v1115
    %v1117 = vpop.f32.mrf.mxu0
    %v1118 = vadd.f32 0.0, %v1117
    %1119 = vdwg.mxu0
    %v1120 = vadd.f32 %v1045, %v1116
    %v1121 = vadd.f32 %v1046, %v1118
    %v1122 = vxor.u32 %v1120, 2147483648
    %v1123 = vxor.u32 %v1121, 2147483648
    %v1124 = vmul.f32 %v1122, 1.442695
    %v1125 = vpow.pop %v1124
    %v1126 = vmul.f32 %v1123, 1.442695
    %v1127 = vpow.pop %v1126
    %v1128 = vadd.f32 %v1125, 1.0
    %v1129 = vadd.f32 %v1127, 1.0
    %v1130 = vrcp.pop %v1128
    %v1131 = vmul.f32 1.0, %v1130
    %v1132 = vrcp.pop %v1129
    %v1133 = vmul.f32 1.0, %v1132
    %v1134 = vtanh.pop %v1120
    %v1135 = vtanh.pop %v1121
    %1137 = vrot.lane.b32.xlu0 %v1133, 32
    %v1138 = vpop.permute.xlu0 %1137
    %v1140 = vsel %vm87, %v1131, %v1138
    %1142 = vrot.lane.b32.xlu0 %v1131, 96
    %v1143 = vpop.permute.xlu0 %1142
    %v1145 = vsel %vm87, %v1143, %v1133
    %1147 = vrot.lane.b32.xlu0 %v1134, 64
    %v1148 = vpop.permute.xlu0 %1147
    %1151 = vrot.lane.b32.xlu0 %v1135, 96
    %v1152 = vpop.permute.xlu0 %1151
    %v1154 = vsel %vm87, %v1148, %v1152
    %1155 = vrot.lane.b32.xlu0 %v1131, 32
    %v1156 = vpop.permute.xlu0 %1155
    %1158 = vrot.lane.b32.xlu0 %v1133, 64
    %v1159 = vpop.permute.xlu0 %1158
    %v1161 = vsel %vm87, %v1156, %v1159
    %v1162 = vmul.f32 %v1145, %v1034
    %v1163 = vmul.f32 %v1140, %v1154
    %v1164 = vadd.f32 %v1162, %v1163
    %v1165 = vtanh.pop %v1164
    %v1166 = vmul.f32 %v1161, %v1165
    %s1167 = scalar_lea.vmem [#allocation9], 96
    %1168 = vst.msk [vmem:[%s1167] sm:$0xff] %vm87, %v1166
    %1170 = vrot.lane.b32.xlu0 %v1166, 96
    %v1171 = vpop.permute.xlu0 %1170
    %s1173 = scalar_lea.vmem [#allocation9], 24
    %1174 = vst.msk [vmem:[%s1173] sm:$0xff] %vm87, %v1171
    %v1175 = vld [vmem:[%s258] sm:$0xff]
    %v1176 = vld [vmem:[#allocation2 + $0x8] sm:$0xff]
    %v1177 = vsel %vm260, %v1166, 0
    %1179 = vmatprep.subr.mxu0 0.0
    %1180 = vmatpush1.msra.mxu0 0.0
    %1181 = vmatprep.subr.mxu0 0.0
    %1182 = vmatpush1.msra.mxu0 0.0
    %1183 = vmatprep.subr.mxu0 0.0
    %1184 = vmatpush1.msra.mxu0 0.0
    %1185 = vmatprep.subr.mxu0 0.0
    %1186 = vmatpush1.msra.mxu0 0.0
    %1187 = vmatprep.subr.mxu0 0.0
    %1188 = vmatpush1.msra.mxu0 0.0
    %1189 = vmatprep.subr.mxu0 0.0
    %1190 = vmatpush1.msra.mxu0 0.0
    %1191 = vmatprep.subr.mxu0 0.0
    %1192 = vmatpush1.msra.mxu0 0.0
    %1193 = vmatprep.subr.mxu0 0.0
    %1194 = vmatpush1.msra.mxu0 0.0
    %1195 = vmatprep.subr.mxu0 %v256
    %1196 = vmatpush1.msra.mxu0 %v255
    %1197 = vmatprep.subr.mxu0 %v254
    %1198 = vmatpush1.msra.mxu0 %v253
    %1199 = vmatprep.subr.mxu0 %v252
    %1200 = vmatpush1.msra.mxu0 %v251
    %1201 = vmatprep.subr.mxu0 %v250
    %1202 = vmatpush1.msra.mxu0 %v249
    %1203 = vmatprep.subr.mxu0 %v248
    %1204 = vmatpush1.msra.mxu0 %v247
    %1205 = vmatprep.subr.mxu0 %v246
    %1206 = vmatpush1.msra.mxu0 %v245
    %1207 = vmatprep.subr.mxu0 %v244
    %1208 = vmatpush1.msra.mxu0 %v243
    %1209 = vmatprep.subr.mxu0 %v242
    %1210 = vmatpush1.msra.mxu0 %v241
    %1211 = vmatprep.subr.mxu0 0.0
    %1212 = vmatpush2.msra.mxu0 0.0
    %1213 = vmatprep.subr.mxu0 0.0
    %1214 = vmatpush2.msra.mxu0 0.0
    %1215 = vmatprep.subr.mxu0 0.0
    %1216 = vmatpush2.msra.mxu0 0.0
    %1217 = vmatprep.subr.mxu0 0.0
    %1218 = vmatpush2.msra.mxu0 0.0
    %1219 = vmatprep.subr.mxu0 0.0
    %1220 = vmatpush2.msra.mxu0 0.0
    %1221 = vmatprep.subr.mxu0 0.0
    %1222 = vmatpush2.msra.mxu0 0.0
    %1223 = vmatprep.subr.mxu0 0.0
    %1224 = vmatpush2.msra.mxu0 0.0
    %1225 = vmatprep.subr.mxu0 0.0
    %1226 = vmatpush2.msra.mxu0 0.0
    %1227 = vmatprep.subr.mxu0 0.0
    %1228 = vmatpush2.msra.mxu0 0.0
    %1229 = vmatprep.subr.mxu0 0.0
    %1230 = vmatpush2.msra.mxu0 0.0
    %1231 = vmatprep.subr.mxu0 0.0
    %1232 = vmatpush2.msra.mxu0 0.0
    %1233 = vmatprep.subr.mxu0 0.0
    %1234 = vmatpush2.msra.mxu0 0.0
    %1235 = vmatprep.subr.mxu0 0.0
    %1236 = vmatpush2.msra.mxu0 0.0
    %1237 = vmatprep.subr.mxu0 0.0
    %1238 = vmatpush2.msra.mxu0 0.0
    %1239 = vmatprep.subr.mxu0 0.0
    %1240 = vmatpush2.msra.mxu0 0.0
    %1241 = vmatprep.subr.mxu0 0.0
    %1242 = vmatpush2.msra.mxu0 0.0
    %1243 = vmatprep.mubr.f32.mxu0 0.0
    %1244 = vmatmul.mubr.f32.gmra.mxu0 %v1177
    %v1245 = vpop.f32.mrf.mxu0
    %v1246 = vadd.f32 0.0, %v1245
    %v1247 = vpop.f32.mrf.mxu0
    %v1248 = vadd.f32 0.0, %v1247
    %1249 = vdwg.mxu0
    %v1250 = vadd.f32 %v1175, %v1246
    %v1251 = vadd.f32 %v1176, %v1248
    %v1252 = vxor.u32 %v1250, 2147483648
    %v1253 = vxor.u32 %v1251, 2147483648
    %v1254 = vmul.f32 %v1252, 1.442695
    %v1255 = vpow.pop %v1254
    %v1256 = vmul.f32 %v1253, 1.442695
    %v1257 = vpow.pop %v1256
    %v1258 = vadd.f32 %v1255, 1.0
    %v1259 = vadd.f32 %v1257, 1.0
    %v1260 = vrcp.pop %v1258
    %v1261 = vmul.f32 1.0, %v1260
    %v1262 = vrcp.pop %v1259
    %v1263 = vmul.f32 1.0, %v1262
    %v1264 = vtanh.pop %v1250
    %v1265 = vtanh.pop %v1251
    %1267 = vrot.lane.b32.xlu0 %v1263, 32
    %v1268 = vpop.permute.xlu0 %1267
    %v1270 = vsel %vm87, %v1261, %v1268
    %1272 = vrot.lane.b32.xlu0 %v1261, 96
    %v1273 = vpop.permute.xlu0 %1272
    %v1275 = vsel %vm87, %v1273, %v1263
    %1277 = vrot.lane.b32.xlu0 %v1264, 64
    %v1278 = vpop.permute.xlu0 %1277
    %1281 = vrot.lane.b32.xlu0 %v1265, 96
    %v1282 = vpop.permute.xlu0 %1281
    %v1284 = vsel %vm87, %v1278, %v1282
    %1285 = vrot.lane.b32.xlu0 %v1261, 32
    %v1286 = vpop.permute.xlu0 %1285
    %1288 = vrot.lane.b32.xlu0 %v1263, 64
    %v1289 = vpop.permute.xlu0 %1288
    %v1291 = vsel %vm87, %v1286, %v1289
    %v1292 = vmul.f32 %v1275, %v1164
    %v1293 = vmul.f32 %v1270, %v1284
    %v1294 = vadd.f32 %v1292, %v1293
    %v1295 = vtanh.pop %v1294
    %v1296 = vmul.f32 %v1291, %v1295
    %s1297 = scalar_lea.vmem [#allocation9], 112
    %1298 = vst.msk [vmem:[%s1297] sm:$0xff] %vm87, %v1296
    %1300 = vrot.lane.b32.xlu0 %v1296, 96
    %v1301 = vpop.permute.xlu0 %1300
    %s1303 = scalar_lea.vmem [#allocation9], 8
    %1304 = vst.msk [vmem:[%s1303] sm:$0xff] %vm87, %v1301
    // Predicated region
    $region30: #{tpu_custom_call.1} parent=1 // pred_check
      _
    $region31: #{tpu_custom_call.1} parent=1 // pred_check_branch
      %1306 = sbr.rel (0) target = $region33
    $region32: #{tpu_custom_call.1} parent=1 // pred_region
      %s1308 = ssub.s32 2048, 2048
      %1309 = vsyncadd [#allocation5], %s1308
      %s1310 = sshll.u32 [#allocation9], 4
      %s1311 = int_to_ptr.vmem [resolvable:$true] %s1310
      %1316 = dma.vmem_to_hbm [thread:$0]  %s1311, 2048, %s4, [#allocation5], 128, 128, 8
    $region33: #{tpu_custom_call.1} parent=1 // pred_fallthru
      _
    // Predicated region
    $region34: #{tpu_custom_call.1} parent=1 // pred_check
      _
    $region35: #{tpu_custom_call.1} parent=1 // pred_check_branch
      %1318 = sbr.rel (0) target = $region37
    $region36: #{tpu_custom_call.1} parent=1 // pred_region
      %1319 = dma.done [#allocation5], 2048
    $region37: #{tpu_custom_call.1} parent=1 // pred_fallthru
      _
    %1320 = vsyncpa [#allocation4], 1
    %1321 = vsyncpa [#allocation7], 1
    %1322 = vsyncpa [#allocation5], 1

</llo_original>
